<compile_context>
chip_gen: v7x
topology: tpu7x:2x2x1
jax: 0.10.0
libtpu: 0.0.40
codegen_flags: <defaults>
</compile_context>

<pallas_src>
from functools import partial

import jax
import jax.numpy as jnp
from jax.experimental import pallas as pl
from jax.experimental.pallas import tpu as pltpu


def _layernorm(x, gamma, beta, eps=1e-5):
    # Statistics kept in f32 regardless of matmul operand dtype.
    mean = jnp.mean(x, axis=-1, keepdims=True)
    var = jnp.mean((x - mean) ** 2, axis=-1, keepdims=True)
    return (x - mean) * jax.lax.rsqrt(var + eps) * gamma + beta


def kv_project_kernel(xkv_ref, posk_ref, ln_ref, wk_ref, wv_ref, kt_ref, v_ref):
    """Per-batch K/V LayerNorm + projection.

    K is produced already transposed, shape (D, Nk), by contracting Wk dim 0 against
    k_in dim 1 (no explicit transpose op), so the attention kernel can take head h as
    a sublane-aligned row slice kT[h*hd:(h+1)*hd, :] with a lane-dense (Nk) minor dim.
    V stays a single lane-dense (Nk, D) block.
    """
    xkv = xkv_ref[...]                                                     # (Nk, D) f32
    k_in = _layernorm(xkv + posk_ref[...],
                      ln_ref[2:3, :], ln_ref[3:4, :]).astype(jnp.bfloat16)
    v_in = _layernorm(xkv, ln_ref[4:5, :], ln_ref[5:6, :]).astype(jnp.bfloat16)
    kt = jax.lax.dot_general(wk_ref[...], k_in,
                             dimension_numbers=(((0,), (1,)), ((), ())),
                             preferred_element_type=jnp.float32)           # (D, Nk) f32
    kt_ref[...] = kt.astype(kt_ref.dtype)
    v_ref[...] = jnp.dot(v_in, wv_ref[...],
                         preferred_element_type=jnp.float32).astype(v_ref.dtype)


def attention_kernel(num_heads, head_dim, approx_recip,
                     xq_ref, posq_ref, kt_ref, v_ref,
                     ln_ref, wq_ref, wp_ref, bp_ref, out_ref):
    # --- Q path for this query tile.  `scale` is pre-folded into Wq host-side.
    q_in = _layernorm(xq_ref[...] + posq_ref[...], ln_ref[0:1, :], ln_ref[1:2, :])
    q = jnp.dot(q_in.astype(jnp.bfloat16), wq_ref[...],
                preferred_element_type=jnp.float32)                        # (TQ, D) f32

    kt = kt_ref[...]                                                       # (D, Nk) bf16
    v = v_ref[...]                                                         # (Nk, D) bf16

    # Per-head attention + accumulated output projection: a single (TQ, Do) f32 slab
    # stays live (no (H, TQ, Do) intermediate, no head scratch round trips).
    out = None
    for h in range(num_heads):
        lo = h * head_dim
        hi = lo + head_dim
        q_h = q[:, lo:hi].astype(jnp.bfloat16)                             # (TQ, hd)
        s = jnp.dot(q_h, kt[lo:hi, :],
                    preferred_element_type=jnp.float32)                    # (TQ, Nk) f32
        s = s - jnp.max(s, axis=-1, keepdims=True)
        p = jnp.exp(s)
        denom = jnp.sum(p, axis=-1, keepdims=True)
        if approx_recip:
            # EUP reciprocal instead of a VPU divide (~1e-3 rel error; gated by flag).
            p = p * pl.reciprocal(denom, approx=True)
        else:
            p = p / denom
        ctx_h = jnp.dot(p.astype(jnp.bfloat16), v[:, lo:hi],
                        preferred_element_type=jnp.float32)                # (TQ, hd)
        contrib = jnp.dot(ctx_h.astype(jnp.bfloat16), wp_ref[h],
                          preferred_element_type=jnp.float32)              # (TQ, Do)
        out = contrib if out is None else out + contrib

    out_ref[...] = (out + bp_ref[...]).astype(out_ref.dtype)


def _vmem_limit_bytes(block_bytes):
    # Size from the actual footprint (inputs/outputs double-buffered by the pipeline)
    # plus headroom for compiler scratch; clamp to a ceiling that is safe on every
    # generation (v7x: 64 MiB/TC physical; v5e/v6e: 128 MiB).
    return int(min(max(2 * block_bytes + (8 << 20), 16 << 20), 48 << 20))


def attentive_block(x_q, x_kv, pos_q, pos_k, params, num_heads, *,
                    tq=None, approx_recip=True):
    B, N, D = x_q.shape
    _, Nk, _ = x_kv.shape
    Do = params["wp"].shape[1]
    head_dim = D // num_heads
    assert head_dim * num_heads == D
    scale = head_dim ** -0.5

    if tq is None:
        # 256 matches the 256-wide MXU M dim on v6e/v7x; fall back to 128 / full N.
        for cand in (256, 128):
            if N % cand == 0:
                tq = cand
                break
        else:
            tq = N
    assert N % tq == 0 and tq % 8 == 0

    f32, bf16 = jnp.float32, jnp.bfloat16

    # --- Host-side (free) parameter prep ------------------------------------------
    zero = jnp.zeros((D,), f32)
    ln = jnp.stack([params["gq"], params["bq"],
                    params["gk"], params["bk"],
                    params["gv"], params["bv"], zero, zero], axis=0).astype(f32)  # (8, D)
    wq_scaled = (params["wq"] * scale).astype(bf16)          # fold softmax scale into Wq
    wk = params["wk"].astype(bf16)
    wv = params["wv"].astype(bf16)
    wp3 = params["wp"].reshape(num_heads, head_dim, Do).astype(bf16)  # per-head Wp
    bp2 = params["bp"].reshape(1, Do).astype(f32)

    # --- Pass 1: per-batch K/V LayerNorm + projection (bf16, K stored transposed). --
    kv_block_bytes = (2 * Nk * D * 4            # x_kv, pos_k tiles (f32)
                      + 8 * D * 4               # stacked LN params
                      + 2 * D * D * 2           # Wk, Wv (bf16)
                      + 2 * D * Nk * 2)         # kT, V outputs (bf16)
    kt, v = pl.pallas_call(
        kv_project_kernel,
        out_shape=(jax.ShapeDtypeStruct((B, D, Nk), bf16),
                   jax.ShapeDtypeStruct((B, Nk, D), bf16)),
        grid_spec=pltpu.PrefetchScalarGridSpec(
            num_scalar_prefetch=0,
            grid=(B,),
            in_specs=[
                pl.BlockSpec((None, Nk, D), lambda b: (b, 0, 0)),   # x_kv
                pl.BlockSpec((None, Nk, D), lambda b: (b, 0, 0)),   # pos_k
                pl.BlockSpec((8, D), lambda b: (0, 0)),             # stacked LN params
                pl.BlockSpec((D, D), lambda b: (0, 0)),             # Wk
                pl.BlockSpec((D, D), lambda b: (0, 0)),             # Wv
            ],
            out_specs=[
                pl.BlockSpec((None, D, Nk), lambda b: (b, 0, 0)),   # K^T (bf16)
                pl.BlockSpec((None, Nk, D), lambda b: (b, 0, 0)),   # V (bf16)
            ],
        ),
        compiler_params=pltpu.CompilerParams(
            dimension_semantics=("parallel",),
            vmem_limit_bytes=_vmem_limit_bytes(kv_block_bytes),
        ),
    )(x_kv, pos_k, ln, wk, wv)

    # --- Pass 2: attention over query tiles; both grid axes parallel. ---------------
    attn_block_bytes = (2 * tq * D * 4                       # x_q, pos_q tiles (f32)
                        + D * Nk * 2 + Nk * D * 2            # K^T, V (bf16)
                        + 8 * D * 4                          # stacked LN params
                        + D * D * 2                          # Wq (bf16)
                        + num_heads * head_dim * Do * 2      # per-head Wp (bf16)
                        + 8 * Do * 4                         # proj bias (padded)
                        + tq * Do * 4)                       # output tile
    kernel = partial(attention_kernel, num_heads, head_dim, approx_recip)
    return pl.pallas_call(
        kernel,
        out_shape=jax.ShapeDtypeStruct((B, N, Do), x_q.dtype),
        grid_spec=pltpu.PrefetchScalarGridSpec(
            num_scalar_prefetch=0,
            grid=(B, N // tq),
            in_specs=[
                pl.BlockSpec((None, tq, D), lambda b, qi: (b, qi, 0)),   # x_q tile
                pl.BlockSpec((None, tq, D), lambda b, qi: (b, qi, 0)),   # pos_q tile
                pl.BlockSpec((None, D, Nk), lambda b, qi: (b, 0, 0)),    # K^T (per batch)
                pl.BlockSpec((None, Nk, D), lambda b, qi: (b, 0, 0)),    # V (per batch)
                pl.BlockSpec((8, D), lambda b, qi: (0, 0)),              # stacked LN params
                pl.BlockSpec((D, D), lambda b, qi: (0, 0)),              # Wq * scale
                pl.BlockSpec((num_heads, head_dim, Do),
                             lambda b, qi: (0, 0, 0)),                   # Wp per head
                pl.BlockSpec((1, Do), lambda b, qi: (0, 0)),             # proj bias
            ],
            out_specs=pl.BlockSpec((None, tq, Do), lambda b, qi: (b, qi, 0)),
        ),
        compiler_params=pltpu.CompilerParams(
            dimension_semantics=("parallel", "parallel"),
            vmem_limit_bytes=_vmem_limit_bytes(attn_block_bytes),
        ),
    )(x_q, pos_q, kt, v, ln, wq_scaled, wp3, bp2)


def reference_jax(x_q, x_kv, pos_q, pos_k, params, num_heads):
    D = x_q.shape[-1]
    hd = D // num_heads
    scale = hd ** -0.5
    qn = _layernorm(x_q + pos_q, params["gq"], params["bq"])
    kn = _layernorm(x_kv + pos_k, params["gk"], params["bk"])
    vn = _layernorm(x_kv, params["gv"], params["bv"])
    q = (qn @ params["wq"]) * scale
    k = kn @ params["wk"]
    v = vn @ params["wv"]
    B, N, _ = q.shape
    Nk = k.shape[1]
    qh = q.reshape(B, N, num_heads, hd).transpose(0, 2, 1, 3)
    kh = k.reshape(B, Nk, num_heads, hd).transpose(0, 2, 1, 3)
    vh = v.reshape(B, Nk, num_heads, hd).transpose(0, 2, 1, 3)
    attn = jax.nn.softmax(jnp.einsum("bhqd,bhkd->bhqk", qh, kh), axis=-1)
    ctx = jnp.einsum("bhqk,bhkd->bhqd", attn, vh).transpose(0, 2, 1, 3).reshape(B, N, -1)
    return ctx @ params["wp"] + params["bp"]


if __name__ == "__main__":
    # Small but lane-dense shapes: D = Do = Nk = 128, N = 256 -> two query tiles of 128.
    B, N, Nk, D = 2, 256, 128, 128
    num_heads = 4
    Do = D   # out_dim defaults to dim

    key = jax.random.PRNGKey(0)
    ks = jax.random.split(key, 12)

    x_q = jax.random.normal(ks[0], (B, N, D), jnp.float32)
    x_kv = jax.random.normal(ks[1], (B, Nk, D), jnp.float32)
    pos_q = jax.random.normal(ks[2], (B, N, D), jnp.float32)
    pos_k = jax.random.normal(ks[3], (B, Nk, D), jnp.float32)

    # Deterministic synthetic parameters (qkv_bias=False, so no q/k/v biases).
    params = {
        "gq": 1.0 + 0.1 * jax.random.normal(ks[4], (D,), jnp.float32),
        "bq": 0.1 * jax.random.normal(ks[5], (D,), jnp.float32),
        "gk": 1.0 + 0.1 * jax.random.normal(ks[6], (D,), jnp.float32),
        "bk": 0.1 * jax.random.normal(ks[7], (D,), jnp.float32),
        "gv": jnp.ones((D,), jnp.float32),
        "bv": jnp.zeros((D,), jnp.float32),
        # Linear weights stored pre-transposed as (in, out) so the kernel does x @ W.
        "wq": 0.1 * jax.random.normal(ks[8], (D, D), jnp.float32),
        "wk": 0.1 * jax.random.normal(ks[9], (D, D), jnp.float32),
        "wv": 0.1 * jax.random.normal(ks[10], (D, D), jnp.float32),
        "wp": 0.1 * jax.random.normal(ks[11], (D, Do), jnp.float32),
        "bp": 0.01 * jnp.ones((Do,), jnp.float32),
    }

    out = attentive_block(x_q, x_kv, pos_q, pos_k, params, num_heads, tq=128)
    out = jax.block_until_ready(out)

    ref = reference_jax(x_q, x_kv, pos_q, pos_k, params, num_heads)
    assert out.shape == (B, N, Do)
    # bf16 MXU operands + approx reciprocal vs f32 reference -> bf16-level tolerance.
    assert jnp.allclose(out, ref, atol=5e-2, rtol=5e-2), "mismatch vs JAX reference"

    print("KERNEL_OK")
</pallas_src>

<mosaic_0001>
module attributes {stable_mosaic.version = 11 : i64} {
  func.func @kv_project_kernel(%arg0: i32, %arg1: memref<1x128x128xf32, #tpu.memory_space<vmem>>, %arg2: memref<1x128x128xf32, #tpu.memory_space<vmem>>, %arg3: memref<8x128xf32, #tpu.memory_space<vmem>>, %arg4: memref<128x128xbf16, #tpu.memory_space<vmem>>, %arg5: memref<128x128xbf16, #tpu.memory_space<vmem>>, %arg6: memref<1x128x128xbf16, #tpu.memory_space<vmem>>, %arg7: memref<1x128x128xbf16, #tpu.memory_space<vmem>>) attributes {dimension_semantics = [#tpu.dimension_semantics<parallel>], iteration_bounds = array<i64: 2>, scalar_prefetch = 0 : i64, scratch_operands = 0 : i64, tpu.core_type = #tpu.core_type<tc>, window_params = [{transform_indices = @transform_0, window_bounds = array<i64: 1, 128, 128>}, {transform_indices = @transform_1, window_bounds = array<i64: 1, 128, 128>}, {pipeline_mode = #tpu.pipeline_mode<synchronous>, transform_indices = @transform_2, window_bounds = array<i64: 8, 128>}, {pipeline_mode = #tpu.pipeline_mode<synchronous>, transform_indices = @transform_3, window_bounds = array<i64: 128, 128>}, {pipeline_mode = #tpu.pipeline_mode<synchronous>, transform_indices = @transform_4, window_bounds = array<i64: 128, 128>}, {transform_indices = @transform_5, window_bounds = array<i64: 1, 128, 128>}, {transform_indices = @transform_6, window_bounds = array<i64: 1, 128, 128>}]} {
    %c0 = arith.constant 0 : index
    %c0_0 = arith.constant 0 : index
    %c0_1 = arith.constant 0 : index
    %0 = vector.load %arg1[%c0, %c0_0, %c0_1] : memref<1x128x128xf32, #tpu.memory_space<vmem>>, vector<1x128x128xf32>
    %1 = vector.shape_cast %0 : vector<1x128x128xf32> to vector<128x128xf32>
    %c0_2 = arith.constant 0 : index
    %c0_3 = arith.constant 0 : index
    %c0_4 = arith.constant 0 : index
    %2 = vector.load %arg2[%c0_2, %c0_3, %c0_4] : memref<1x128x128xf32, #tpu.memory_space<vmem>>, vector<1x128x128xf32>
    %3 = vector.shape_cast %2 : vector<1x128x128xf32> to vector<128x128xf32>
    %4 = arith.addf %1, %3 : vector<128x128xf32>
    %c2 = arith.constant 2 : index
    %c0_5 = arith.constant 0 : index
    %5 = vector.load %arg3[%c2, %c0_5] : memref<8x128xf32, #tpu.memory_space<vmem>>, vector<1x128xf32>
    %c3 = arith.constant 3 : index
    %c0_6 = arith.constant 0 : index
    %6 = vector.load %arg3[%c3, %c0_6] : memref<8x128xf32, #tpu.memory_space<vmem>>, vector<1x128xf32>
    %cst = arith.constant dense<0.000000e+00> : vector<128xf32>
    %7 = vector.multi_reduction <add>, %4, %cst [1] : vector<128x128xf32> to vector<128xf32>
    %8 = vector.shape_cast %7 : vector<128xf32> to vector<128x1xf32>
    %cst_7 = arith.constant 1.280000e+02 : f32
    %9 = vector.broadcast %cst_7 : f32 to vector<128x1xf32>
    %10 = arith.divf %8, %9 : vector<128x1xf32>
    %11 = vector.broadcast %10 : vector<128x1xf32> to vector<128x128xf32>
    %12 = arith.subf %4, %11 : vector<128x128xf32>
    %13 = arith.mulf %12, %12 : vector<128x128xf32>
    %cst_8 = arith.constant dense<0.000000e+00> : vector<128xf32>
    %14 = vector.multi_reduction <add>, %13, %cst_8 [1] : vector<128x128xf32> to vector<128xf32>
    %15 = vector.shape_cast %14 : vector<128xf32> to vector<128x1xf32>
    %cst_9 = arith.constant 1.280000e+02 : f32
    %16 = vector.broadcast %cst_9 : f32 to vector<128x1xf32>
    %17 = arith.divf %15, %16 : vector<128x1xf32>
    %18 = vector.broadcast %10 : vector<128x1xf32> to vector<128x128xf32>
    %19 = arith.subf %4, %18 : vector<128x128xf32>
    %cst_10 = arith.constant 9.99999974E-6 : f32
    %20 = vector.broadcast %cst_10 : f32 to vector<128x1xf32>
    %21 = arith.addf %17, %20 : vector<128x1xf32>
    %22 = math.rsqrt %21 : vector<128x1xf32>
    %23 = vector.broadcast %22 : vector<128x1xf32> to vector<128x128xf32>
    %24 = arith.mulf %19, %23 : vector<128x128xf32>
    %25 = vector.broadcast %5 : vector<1x128xf32> to vector<128x128xf32>
    %26 = arith.mulf %24, %25 : vector<128x128xf32>
    %27 = vector.broadcast %6 : vector<1x128xf32> to vector<128x128xf32>
    %28 = arith.addf %26, %27 : vector<128x128xf32>
    %29 = arith.truncf %28 : vector<128x128xf32> to vector<128x128xbf16>
    %c4 = arith.constant 4 : index
    %c0_11 = arith.constant 0 : index
    %30 = vector.load %arg3[%c4, %c0_11] : memref<8x128xf32, #tpu.memory_space<vmem>>, vector<1x128xf32>
    %c5 = arith.constant 5 : index
    %c0_12 = arith.constant 0 : index
    %31 = vector.load %arg3[%c5, %c0_12] : memref<8x128xf32, #tpu.memory_space<vmem>>, vector<1x128xf32>
    %cst_13 = arith.constant dense<0.000000e+00> : vector<128xf32>
    %32 = vector.multi_reduction <add>, %1, %cst_13 [1] : vector<128x128xf32> to vector<128xf32>
    %33 = vector.shape_cast %32 : vector<128xf32> to vector<128x1xf32>
    %cst_14 = arith.constant 1.280000e+02 : f32
    %34 = vector.broadcast %cst_14 : f32 to vector<128x1xf32>
    %35 = arith.divf %33, %34 : vector<128x1xf32>
    %36 = vector.broadcast %35 : vector<128x1xf32> to vector<128x128xf32>
    %37 = arith.subf %1, %36 : vector<128x128xf32>
    %38 = arith.mulf %37, %37 : vector<128x128xf32>
    %cst_15 = arith.constant dense<0.000000e+00> : vector<128xf32>
    %39 = vector.multi_reduction <add>, %38, %cst_15 [1] : vector<128x128xf32> to vector<128xf32>
    %40 = vector.shape_cast %39 : vector<128xf32> to vector<128x1xf32>
    %cst_16 = arith.constant 1.280000e+02 : f32
    %41 = vector.broadcast %cst_16 : f32 to vector<128x1xf32>
    %42 = arith.divf %40, %41 : vector<128x1xf32>
    %43 = vector.broadcast %35 : vector<128x1xf32> to vector<128x128xf32>
    %44 = arith.subf %1, %43 : vector<128x128xf32>
    %cst_17 = arith.constant 9.99999974E-6 : f32
    %45 = vector.broadcast %cst_17 : f32 to vector<128x1xf32>
    %46 = arith.addf %42, %45 : vector<128x1xf32>
    %47 = math.rsqrt %46 : vector<128x1xf32>
    %48 = vector.broadcast %47 : vector<128x1xf32> to vector<128x128xf32>
    %49 = arith.mulf %44, %48 : vector<128x128xf32>
    %50 = vector.broadcast %30 : vector<1x128xf32> to vector<128x128xf32>
    %51 = arith.mulf %49, %50 : vector<128x128xf32>
    %52 = vector.broadcast %31 : vector<1x128xf32> to vector<128x128xf32>
    %53 = arith.addf %51, %52 : vector<128x128xf32>
    %54 = arith.truncf %53 : vector<128x128xf32> to vector<128x128xbf16>
    %c0_18 = arith.constant 0 : index
    %c0_19 = arith.constant 0 : index
    %55 = vector.load %arg4[%c0_18, %c0_19] : memref<128x128xbf16, #tpu.memory_space<vmem>>, vector<128x128xbf16>
    %cst_20 = arith.constant dense<0.000000e+00> : vector<128x128xf32>
    %56 = tpu.matmul %55, %29, %cst_20 {dimension_numbers = #tpu.dot_dimension_numbers<[0], [1], [1], [0], [0, 1, 1, 0], [], []>} : vector<128x128xbf16>, vector<128x128xbf16>, vector<128x128xf32> -> vector<128x128xf32>
    %57 = arith.truncf %56 : vector<128x128xf32> to vector<128x128xbf16>
    %c0_21 = arith.constant 0 : index
    %c0_22 = arith.constant 0 : index
    %c0_23 = arith.constant 0 : index
    %58 = vector.load %arg6[%c0_21, %c0_22, %c0_23] : memref<1x128x128xbf16, #tpu.memory_space<vmem>>, vector<1x128x128xbf16>
    %59 = vector.shape_cast %58 : vector<1x128x128xbf16> to vector<128x128xbf16>
    %60 = vector.shape_cast %57 : vector<128x128xbf16> to vector<1x128x128xbf16>
    tpu.vector_store %arg6[%c0_21, %c0_22, %c0_23], %60 {strides = array<i32>} : memref<1x128x128xbf16, #tpu.memory_space<vmem>>, vector<1x128x128xbf16>,
    %c0_24 = arith.constant 0 : index
    %c0_25 = arith.constant 0 : index
    %61 = vector.load %arg5[%c0_24, %c0_25] : memref<128x128xbf16, #tpu.memory_space<vmem>>, vector<128x128xbf16>
    %cst_26 = arith.constant dense<0.000000e+00> : vector<128x128xf32>
    %62 = tpu.matmul %54, %61, %cst_26 {dimension_numbers = #tpu.dot_dimension_numbers<[1], [0], [0], [1], [0, 0, 1, 1], [], []>} : vector<128x128xbf16>, vector<128x128xbf16>, vector<128x128xf32> -> vector<128x128xf32>
    %63 = arith.truncf %62 : vector<128x128xf32> to vector<128x128xbf16>
    %c0_27 = arith.constant 0 : index
    %c0_28 = arith.constant 0 : index
    %c0_29 = arith.constant 0 : index
    %64 = vector.load %arg7[%c0_27, %c0_28, %c0_29] : memref<1x128x128xbf16, #tpu.memory_space<vmem>>, vector<1x128x128xbf16>
    %65 = vector.shape_cast %64 : vector<1x128x128xbf16> to vector<128x128xbf16>
    %66 = vector.shape_cast %63 : vector<128x128xbf16> to vector<1x128x128xbf16>
    tpu.vector_store %arg7[%c0_27, %c0_28, %c0_29], %66 {strides = array<i32>} : memref<1x128x128xbf16, #tpu.memory_space<vmem>>, vector<1x128x128xbf16>,
    return
  }
  func.func @transform_0(%arg0: i32) -> (i32, i32, i32) {
    %c0_i32 = arith.constant 0 : i32
    %c0_i32_0 = arith.constant 0 : i32
    %c0_i32_1 = arith.constant 0 : i32
    return %arg0, %c0_i32, %c0_i32_0 : i32, i32, i32
  }
  func.func @transform_1(%arg0: i32) -> (i32, i32, i32) {
    %c0_i32 = arith.constant 0 : i32
    %c0_i32_0 = arith.constant 0 : i32
    %c0_i32_1 = arith.constant 0 : i32
    return %arg0, %c0_i32, %c0_i32_0 : i32, i32, i32
  }
  func.func @transform_2(%arg0: i32) -> (i32, i32) {
    %c0_i32 = arith.constant 0 : i32
    %c0_i32_0 = arith.constant 0 : i32
    %c0_i32_1 = arith.constant 0 : i32
    return %c0_i32, %c0_i32_0 : i32, i32
  }
  func.func @transform_3(%arg0: i32) -> (i32, i32) {
    %c0_i32 = arith.constant 0 : i32
    %c0_i32_0 = arith.constant 0 : i32
    %c0_i32_1 = arith.constant 0 : i32
    return %c0_i32, %c0_i32_0 : i32, i32
  }
  func.func @transform_4(%arg0: i32) -> (i32, i32) {
    %c0_i32 = arith.constant 0 : i32
    %c0_i32_0 = arith.constant 0 : i32
    %c0_i32_1 = arith.constant 0 : i32
    return %c0_i32, %c0_i32_0 : i32, i32
  }
  func.func @transform_5(%arg0: i32) -> (i32, i32, i32) {
    %c0_i32 = arith.constant 0 : i32
    %c0_i32_0 = arith.constant 0 : i32
    %c0_i32_1 = arith.constant 0 : i32
    return %arg0, %c0_i32, %c0_i32_0 : i32, i32, i32
  }
  func.func @transform_6(%arg0: i32) -> (i32, i32, i32) {
    %c0_i32 = arith.constant 0 : i32
    %c0_i32_0 = arith.constant 0 : i32
    %c0_i32_1 = arith.constant 0 : i32
    return %arg0, %c0_i32, %c0_i32_0 : i32, i32, i32
  }
}

</mosaic_0001>

<llo_original>
// kernel: tpu_custom_call.1
$region0: #{tpu_custom_call.1}
  #allocation0 [shape = 'u32[]', space=smem, size = 0x4, offset = 0x4, fixed_abs, tag = 'smem constant byte address 0x4 - core index']
  #allocation1 [shape = 'u32[144,128]{1,0:T(1,128)}', space=vmem, size = 0x12000, scoped, tag = 'internal scratch']
  %s0 = inlined_call_operand.hbm [shape: f32[2,128,128], index: 0, kind: input, shape index: {}]
  %s1 = inlined_call_operand.hbm [shape: f32[2,128,128], index: 1, kind: input, shape index: {}]
  %s2 = inlined_call_operand.hbm [shape: f32[8,128], index: 2, kind: input, shape index: {}]
  %s3 = inlined_call_operand.hbm [shape: bf16[128,128], index: 3, kind: input, shape index: {}]
  %s4 = inlined_call_operand.hbm [shape: bf16[128,128], index: 4, kind: input, shape index: {}]
  %s5 = inlined_call_operand.hbm [shape: bf16[2,128,128], index: 5, kind: output, shape index: {0}]
  %s6 = inlined_call_operand.hbm [shape: bf16[2,128,128], index: 6, kind: output, shape index: {1}]
  %7 = xla_tuple %s5, %s6
  %s8 = sld [smem:[#allocation0]]
  $region81: #{tpu_custom_call.1} parent=0
    _
  %s10 = ssub.s32 1, %s8
  %s11 = scalar_select 0, %s10, %s8
  $region1: #{tpu_custom_call.1} parent=0
    #allocation2 [shape = 'u8[131072]{0}', space=vmem, size = 0x20000, scoped, tag = 'input window, operand 0']
    #allocation3 [shape = 's32[2]{0}', space=sflag, size = 0x8, scoped, tag = 'scoped memory for tpu_custom_call.1']
    #allocation4 [shape = 's32[2]{0}', space=sflag, size = 0x8, scoped, tag = 'scoped memory for tpu_custom_call.1']
    #allocation5 [shape = 'u8[131072]{0}', space=vmem, size = 0x20000, scoped, tag = 'input window, operand 1']
    #allocation6 [shape = 's32[2]{0}', space=sflag, size = 0x8, scoped, tag = 'scoped memory for tpu_custom_call.1']
    #allocation7 [shape = 'u8[4096]{0}', space=vmem, size = 0x1000, scoped, tag = 'input window, operand 2, single buffered']
    #allocation8 [shape = 'u8[32768]{0}', space=vmem, size = 0x8000, scoped, tag = 'input window, operand 3, single buffered']
    #allocation9 [shape = 's32[1]{0}', space=sflag, size = 0x4, scoped, tag = 'scoped memory for tpu_custom_call.1']
    #allocation10 [shape = 'u8[32768]{0}', space=vmem, size = 0x8000, scoped, tag = 'input window, operand 4, single buffered']
    #allocation11 [shape = 'u8[65536]{0}', space=vmem, size = 0x10000, scoped, tag = 'output window, operand 0']
    #allocation12 [shape = 'u8[65536]{0}', space=vmem, size = 0x10000, scoped, tag = 'output window, operand 1']
    #allocation13 [shape = 's32[2]{0}', space=sflag, size = 0x8, scoped, tag = 'scoped memory for tpu_custom_call.1']
    %12 = vsyncpa [#allocation3], 0
    %s13 = scalar_lea.sflag [#allocation3], 1
    %14 = vsyncpa %s13, 0
    %15 = vsyncpa [#allocation6], 0
    %s16 = scalar_lea.sflag [#allocation6], 1
    %17 = vsyncpa %s16, 0
    %18 = vsyncpa [#allocation9], 0
    %19 = vsyncpa [#allocation4], 0
    %s20 = scalar_lea.sflag [#allocation4], 1
    %21 = vsyncpa %s20, 0
    %22 = vsyncpa [#allocation13], 0
    %s23 = scalar_lea.sflag [#allocation13], 1
    %24 = vsyncpa %s23, 0
    loop: start=0, step=1, limit=4
    $region2: #{tpu_custom_call.1} parent=1 // loop_pre_header
      _
    $region3: #{tpu_custom_call.1} parent=1 // loop_header
      %s26 = sphi 0, %s30
      %p27 = scmp.ge.s32.totalorder %s26, 4
      %s36 = sphi 0, %s38
      %s39 = sphi 0, %s36
      %s40 = sphi 0, %s39
      %s56 = sphi 0, %s40
      %s62 = sphi 0, %s64
      %s65 = sphi 0, %s62
      %s66 = sphi 0, %s65
      %s82 = sphi 0, %s66
      %s86 = sphi 0, %s86
      %s88 = sphi 0, %s86
      %s89 = sphi 0, %s88
      %s103 = sphi 0, %s89
      %s107 = sphi 0, %s107
      %s109 = sphi 0, %s107
      %s110 = sphi 0, %s109
      %s124 = sphi 0, %s110
      %s128 = sphi 0, %s128
      %s130 = sphi 0, %s128
      %s131 = sphi 0, %s130
      %s145 = sphi 0, %s131
      %s151 = sphi 0, %s153
      %s154 = sphi 0, %s151
      %s155 = sphi 0, %s154
      %s171 = sphi 0, %s155
      %s177 = sphi 0, %s179
      %s180 = sphi 0, %s177
      %s181 = sphi 0, %s180
      %s197 = sphi 0, %s181
    $region4: #{tpu_custom_call.1} parent=1 // loop_header_branch
      %29 = sbr.rel (%p27) target = $region8
    $region5: #{tpu_custom_call.1} parent=1 // loop_body
      %s31 = ssub.s32 %s26, 1
      %s32 = ssub.s32 %s26, 2
      %s33 = sadd.s32 %s26, 1
      %s34 = ssub.s32 %s26, %s33
      %p35 = scmp.eq.s32.totalorder %s34, 0
      %s37 = sadd.s32 %s36, 1
      %s38 = scalar_select %p35, %s36, %s37
      %p41 = pneg %p35
      %p42 = scmp.eq.s32.totalorder %s26, 1
      %p43 = por %p41, %p42
      %p44 = scmp.ne.s32.totalorder %s36, %s39
      %p45 = scmp.eq.s32.totalorder %s26, 0
      %p46 = por %p44, %p45
      %p47 = scmp.ne.s32.totalorder %s36, %s39
      %p48 = scmp.eq.s32.totalorder %s31, 1
      %p49 = por %p47, %p48
      %p50 = scmp.ne.s32.totalorder %s39, %s40
      %p51 = scmp.eq.s32.totalorder %s31, 0
      %p52 = por %p50, %p51
      %p53 = scmp.ne.s32.totalorder %s39, %s40
      %p54 = scmp.eq.s32.totalorder %s32, 1
      %p55 = por %p53, %p54
      %p57 = scmp.ne.s32.totalorder %s40, %s56
      %p58 = scmp.eq.s32.totalorder %s32, 0
      %p59 = por %p57, %p58
      %s60 = ssub.s32 %s26, %s33
      %p61 = scmp.eq.s32.totalorder %s60, 0
      %s63 = sadd.s32 %s62, 1
      %s64 = scalar_select %p61, %s62, %s63
      %p67 = pneg %p61
      %p68 = scmp.eq.s32.totalorder %s26, 1
      %p69 = por %p67, %p68
      %p70 = scmp.ne.s32.totalorder %s62, %s65
      %p71 = scmp.eq.s32.totalorder %s26, 0
      %p72 = por %p70, %p71
      %p73 = scmp.ne.s32.totalorder %s62, %s65
      %p74 = scmp.eq.s32.totalorder %s31, 1
      %p75 = por %p73, %p74
      %p76 = scmp.ne.s32.totalorder %s65, %s66
      %p77 = scmp.eq.s32.totalorder %s31, 0
      %p78 = por %p76, %p77
      %p79 = scmp.ne.s32.totalorder %s65, %s66
      %p80 = scmp.eq.s32.totalorder %s32, 1
      %p81 = por %p79, %p80
      %p83 = scmp.ne.s32.totalorder %s66, %s82
      %p84 = scmp.eq.s32.totalorder %s32, 0
      %p85 = por %p83, %p84
      %s87 = sadd.s32 %s86, 1
      %p90 = scmp.eq.s32.totalorder %s26, 1
      %p91 = scmp.ne.s32.totalorder %s86, %s88
      %p92 = scmp.eq.s32.totalorder %s26, 0
      %p93 = por %p91, %p92
      %p94 = scmp.ne.s32.totalorder %s86, %s88
      %p95 = scmp.eq.s32.totalorder %s31, 1
      %p96 = por %p94, %p95
      %p97 = scmp.ne.s32.totalorder %s88, %s89
      %p98 = scmp.eq.s32.totalorder %s31, 0
      %p99 = por %p97, %p98
      %p100 = scmp.ne.s32.totalorder %s88, %s89
      %p101 = scmp.eq.s32.totalorder %s32, 1
      %p102 = por %p100, %p101
      %p104 = scmp.ne.s32.totalorder %s89, %s103
      %p105 = scmp.eq.s32.totalorder %s32, 0
      %p106 = por %p104, %p105
      %s108 = sadd.s32 %s107, 1
      %p111 = scmp.eq.s32.totalorder %s26, 1
      %p112 = scmp.ne.s32.totalorder %s107, %s109
      %p113 = scmp.eq.s32.totalorder %s26, 0
      %p114 = por %p112, %p113
      %p115 = scmp.ne.s32.totalorder %s107, %s109
      %p116 = scmp.eq.s32.totalorder %s31, 1
      %p117 = por %p115, %p116
      %p118 = scmp.ne.s32.totalorder %s109, %s110
      %p119 = scmp.eq.s32.totalorder %s31, 0
      %p120 = por %p118, %p119
      %p121 = scmp.ne.s32.totalorder %s109, %s110
      %p122 = scmp.eq.s32.totalorder %s32, 1
      %p123 = por %p121, %p122
      %p125 = scmp.ne.s32.totalorder %s110, %s124
      %p126 = scmp.eq.s32.totalorder %s32, 0
      %p127 = por %p125, %p126
      %s129 = sadd.s32 %s128, 1
      %p132 = scmp.eq.s32.totalorder %s26, 1
      %p133 = scmp.ne.s32.totalorder %s128, %s130
      %p134 = scmp.eq.s32.totalorder %s26, 0
      %p135 = por %p133, %p134
      %p136 = scmp.ne.s32.totalorder %s128, %s130
      %p137 = scmp.eq.s32.totalorder %s31, 1
      %p138 = por %p136, %p137
      %p139 = scmp.ne.s32.totalorder %s130, %s131
      %p140 = scmp.eq.s32.totalorder %s31, 0
      %p141 = por %p139, %p140
      %p142 = scmp.ne.s32.totalorder %s130, %s131
      %p143 = scmp.eq.s32.totalorder %s32, 1
      %p144 = por %p142, %p143
      %p146 = scmp.ne.s32.totalorder %s131, %s145
      %p147 = scmp.eq.s32.totalorder %s32, 0
      %p148 = por %p146, %p147
      %s149 = ssub.s32 %s26, %s33
      %p150 = scmp.eq.s32.totalorder %s149, 0
      %s152 = sadd.s32 %s151, 1
      %s153 = scalar_select %p150, %s151, %s152
      %p156 = pneg %p150
      %p157 = scmp.eq.s32.totalorder %s26, 1
      %p158 = por %p156, %p157
      %p159 = scmp.ne.s32.totalorder %s151, %s154
      %p160 = scmp.eq.s32.totalorder %s26, 0
      %p161 = por %p159, %p160
      %p162 = scmp.ne.s32.totalorder %s151, %s154
      %p163 = scmp.eq.s32.totalorder %s31, 1
      %p164 = por %p162, %p163
      %p165 = scmp.ne.s32.totalorder %s154, %s155
      %p166 = scmp.eq.s32.totalorder %s31, 0
      %p167 = por %p165, %p166
      %p168 = scmp.ne.s32.totalorder %s154, %s155
      %p169 = scmp.eq.s32.totalorder %s32, 1
      %p170 = por %p168, %p169
      %p172 = scmp.ne.s32.totalorder %s155, %s171
      %p173 = scmp.eq.s32.totalorder %s32, 0
      %p174 = por %p172, %p173
      %s175 = ssub.s32 %s26, %s33
      %p176 = scmp.eq.s32.totalorder %s175, 0
      %s178 = sadd.s32 %s177, 1
      %s179 = scalar_select %p176, %s177, %s178
      %p182 = pneg %p176
      %p183 = scmp.eq.s32.totalorder %s26, 1
      %p184 = por %p182, %p183
      %p185 = scmp.ne.s32.totalorder %s177, %s180
      %p186 = scmp.eq.s32.totalorder %s26, 0
      %p187 = por %p185, %p186
      %p188 = scmp.ne.s32.totalorder %s177, %s180
      %p189 = scmp.eq.s32.totalorder %s31, 1
      %p190 = por %p188, %p189
      %p191 = scmp.ne.s32.totalorder %s180, %s181
      %p192 = scmp.eq.s32.totalorder %s31, 0
      %p193 = por %p191, %p192
      %p194 = scmp.ne.s32.totalorder %s180, %s181
      %p195 = scmp.eq.s32.totalorder %s32, 1
      %p196 = por %p194, %p195
      %p198 = scmp.ne.s32.totalorder %s181, %s197
      %p199 = scmp.eq.s32.totalorder %s32, 0
      %p200 = por %p198, %p199
      %p201 = scmp.le.s32.totalorder 1, %s26
      %p202 = scmp.lt.s32.totalorder %s26, 3
      %p203 = pnand %p201, %p202
      %p204 = pneg %p203
      // Predicated region
      $region9: #{tpu_custom_call.1} parent=5 // pred_check
        _
      $region10: #{tpu_custom_call.1} parent=5 // pred_check_branch
        %206 = sbr.rel (%p203) target = $region12
      $region11: #{tpu_custom_call.1} parent=5 // pred_region
        %s207 = ssub.s32 %s26, 1
        // Predicated region
        $region13: #{tpu_custom_call.1} parent=11 // pred_check
          %p208 = pneg %p99
        $region14: #{tpu_custom_call.1} parent=11 // pred_check_branch
          %210 = sbr.rel (%p208) target = $region16
        $region15: #{tpu_custom_call.1} parent=11 // pred_region
          %s212 = ssub.s32 128, 128
          %213 = vsyncadd [#allocation6], %s212
          %s215 = sshll.u32 [#allocation7], 4
          %s216 = int_to_ptr.vmem [resolvable:$true] %s215
          %218 = dma.hbm_to_vmem [thread:$0]  %s2, 128, %s216, [#allocation6]
        $region16: #{tpu_custom_call.1} parent=11 // pred_fallthru
          _
        // Predicated region
        $region17: #{tpu_custom_call.1} parent=11 // pred_check
          %p219 = pneg %p120
        $region18: #{tpu_custom_call.1} parent=11 // pred_check_branch
          %221 = sbr.rel (%p219) target = $region20
        $region19: #{tpu_custom_call.1} parent=11 // pred_region
          %s223 = ssub.s32 1024, 1024
          %224 = vsyncadd [#allocation9], %s223
          %s225 = sshll.u32 [#allocation8], 4
          %s226 = int_to_ptr.vmem [resolvable:$true] %s225
          %231 = dma.hbm_to_vmem [thread:$0]  %s3, 1024, %s226, [#allocation9], 64, 64, 4
        $region20: #{tpu_custom_call.1} parent=11 // pred_fallthru
          _
        // Predicated region
        $region21: #{tpu_custom_call.1} parent=11 // pred_check
          %p232 = pneg %p141
        $region22: #{tpu_custom_call.1} parent=11 // pred_check_branch
          %234 = sbr.rel (%p232) target = $region24
        $region23: #{tpu_custom_call.1} parent=11 // pred_region
          %s236 = ssub.s32 1024, 1024
          %237 = vsyncadd [#allocation9], %s236
          %s238 = sshll.u32 [#allocation10], 4
          %s239 = int_to_ptr.vmem [resolvable:$true] %s238
          %244 = dma.hbm_to_vmem [thread:$0]  %s4, 1024, %s239, [#allocation9], 64, 64, 4
        $region24: #{tpu_custom_call.1} parent=11 // pred_fallthru
          _
      $region12: #{tpu_custom_call.1} parent=5 // pred_fallthru
        _
      %p245 = scmp.lt.s32.totalorder %s26, 2
      // Predicated region
      $region25: #{tpu_custom_call.1} parent=5 // pred_check
        %p246 = pneg %p245
      $region26: #{tpu_custom_call.1} parent=5 // pred_check_branch
        %248 = sbr.rel (%p246) target = $region28
      $region27: #{tpu_custom_call.1} parent=5 // pred_region
        // Predicated region
        $region29: #{tpu_custom_call.1} parent=27 // pred_check
          %p249 = pneg %p46
        $region30: #{tpu_custom_call.1} parent=27 // pred_check_branch
          %251 = sbr.rel (%p249) target = $region32
        $region31: #{tpu_custom_call.1} parent=27 // pred_region
          %s252 = sand.u32 %s36, 1
          %s253 = scalar_lea.sflag [#allocation3], %s252
          %s254 = sand.u32 %s36, 1
          %s255 = smul.addr %s254, 128
          %s256 = scalar_lea.vmem [#allocation2], %s255
          %s258 = ssub.s32 2048, 2048
          %259 = vsyncadd %s253, %s258
          %s260 = smul.addr %s26, 16
          %s261 = smul.addr %s260, 128
          %s262 = scalar_lea.hbm %s0, %s261
          %s263 = sshll.u32 %s256, 4
          %s264 = int_to_ptr.vmem [resolvable:$true] %s263
          %269 = dma.hbm_to_vmem [thread:$0]  %s262, 2048, %s264, %s253, 128, 128, 8
        $region32: #{tpu_custom_call.1} parent=27 // pred_fallthru
          _
        // Predicated region
        $region33: #{tpu_custom_call.1} parent=27 // pred_check
          %p270 = pneg %p72
        $region34: #{tpu_custom_call.1} parent=27 // pred_check_branch
          %272 = sbr.rel (%p270) target = $region36
        $region35: #{tpu_custom_call.1} parent=27 // pred_region
          %s273 = sand.u32 %s26, 1
          %s274 = scalar_lea.sflag [#allocation6], %s273
          %s275 = sand.u32 %s62, 1
          %s276 = smul.addr %s275, 128
          %s277 = scalar_lea.vmem [#allocation5], %s276
          %s279 = ssub.s32 2048, 2048
          %280 = vsyncadd %s274, %s279
          %s281 = smul.addr %s26, 16
          %s282 = smul.addr %s281, 128
          %s283 = scalar_lea.hbm %s1, %s282
          %s284 = sshll.u32 %s277, 4
          %s285 = int_to_ptr.vmem [resolvable:$true] %s284
          %290 = dma.hbm_to_vmem [thread:$0]  %s283, 2048, %s285, %s274, 128, 128, 8
        $region36: #{tpu_custom_call.1} parent=27 // pred_fallthru
          _
      $region28: #{tpu_custom_call.1} parent=5 // pred_fallthru
        _
      %p291 = scmp.le.s32.totalorder 1, %s26
      %p292 = scmp.lt.s32.totalorder %s26, 3
      %p293 = pnand %p291, %p292
      %p294 = pneg %p293
      // Predicated region
      $region37: #{tpu_custom_call.1} parent=5 // pred_check
        _
      $region38: #{tpu_custom_call.1} parent=5 // pred_check_branch
        %296 = sbr.rel (%p293) target = $region40
      $region39: #{tpu_custom_call.1} parent=5 // pred_region
        %s297 = ssub.s32 %s26, 1
        %s298 = sand.u32 %s39, 1
        %s299 = scalar_lea.sflag [#allocation3], %s298
        %s300 = sand.u32 %s39, 1
        %s301 = smul.addr %s300, 128
        %s302 = scalar_lea.vmem [#allocation2], %s301
        // Predicated region
        $region41: #{tpu_custom_call.1} parent=39 // pred_check
          %p303 = pneg %p52
        $region42: #{tpu_custom_call.1} parent=39 // pred_check_branch
          %305 = sbr.rel (%p303) target = $region44
        $region43: #{tpu_custom_call.1} parent=39 // pred_region
          %306 = dma.done %s299, 2048
        $region44: #{tpu_custom_call.1} parent=39 // pred_fallthru
          _
        %s307 = sand.u32 %s31, 1
        %s308 = scalar_lea.sflag [#allocation6], %s307
        %s309 = sand.u32 %s65, 1
        %s310 = smul.addr %s309, 128
        %s311 = scalar_lea.vmem [#allocation5], %s310
        // Predicated region
        $region45: #{tpu_custom_call.1} parent=39 // pred_check
          %p312 = pneg %p78
        $region46: #{tpu_custom_call.1} parent=39 // pred_check_branch
          %314 = sbr.rel (%p312) target = $region48
        $region47: #{tpu_custom_call.1} parent=39 // pred_region
          %315 = dma.done %s308, 2048
        $region48: #{tpu_custom_call.1} parent=39 // pred_fallthru
          _
        // Predicated region
        $region49: #{tpu_custom_call.1} parent=39 // pred_check
          %p316 = pneg %p99
        $region50: #{tpu_custom_call.1} parent=39 // pred_check_branch
          %318 = sbr.rel (%p316) target = $region52
        $region51: #{tpu_custom_call.1} parent=39 // pred_region
          %319 = dma.done [#allocation6], 128
        $region52: #{tpu_custom_call.1} parent=39 // pred_fallthru
          _
        // Predicated region
        $region53: #{tpu_custom_call.1} parent=39 // pred_check
          %p320 = pneg %p120
        $region54: #{tpu_custom_call.1} parent=39 // pred_check_branch
          %322 = sbr.rel (%p320) target = $region56
        $region55: #{tpu_custom_call.1} parent=39 // pred_region
          %323 = dma.done [#allocation9], 1024
        $region56: #{tpu_custom_call.1} parent=39 // pred_fallthru
          _
        // Predicated region
        $region57: #{tpu_custom_call.1} parent=39 // pred_check
          %p324 = pneg %p141
        $region58: #{tpu_custom_call.1} parent=39 // pred_check_branch
          %326 = sbr.rel (%p324) target = $region60
        $region59: #{tpu_custom_call.1} parent=39 // pred_region
          %327 = dma.done [#allocation9], 1024
        $region60: #{tpu_custom_call.1} parent=39 // pred_fallthru
          _
        %s328 = sand.u32 %s39, 1
        %s329 = scalar_lea.sflag [#allocation3], %s328
        %s330 = sand.u32 %s39, 1
        %s331 = smul.addr %s330, 128
        %s332 = scalar_lea.vmem [#allocation2], %s331
        %p333 = pneg %p52
        %p334 = pneg %p49
        %s335 = sand.u32 %s31, 1
        %s336 = scalar_lea.sflag [#allocation6], %s335
        %s337 = sand.u32 %s65, 1
        %s338 = smul.addr %s337, 128
        %s339 = scalar_lea.vmem [#allocation5], %s338
        %p340 = pneg %p78
        %p341 = pneg %p75
        %p342 = pneg %p99
        %p343 = pneg %p96
        %p344 = pneg %p120
        %p345 = pneg %p117
        %p346 = pneg %p141
        %p347 = pneg %p138
        %p348 = pneg %p167
        %p349 = pneg %p164
        %s350 = sand.u32 %s154, 1
        %s351 = scalar_lea.sflag [#allocation4], %s350
        %s352 = sand.u32 %s154, 1
        %s353 = smul.addr %s352, 64
        %s354 = scalar_lea.vmem [#allocation11], %s353
        %p355 = pneg %p193
        %p356 = pneg %p190
        %s357 = sand.u32 %s180, 1
        %s358 = scalar_lea.sflag [#allocation13], %s357
        %s359 = sand.u32 %s180, 1
        %s360 = smul.addr %s359, 64
        %s361 = scalar_lea.vmem [#allocation12], %s360
        %v363 = vld [vmem:[%s302] sm:$0xff]
        %v364 = vld [vmem:[%s302 + $0x8] sm:$0xff]
        %v365 = vld [vmem:[%s302 + $0x10] sm:$0xff]
        %v366 = vld [vmem:[%s302 + $0x18] sm:$0xff]
        %v367 = vld [vmem:[%s302 + $0x20] sm:$0xff]
        %v368 = vld [vmem:[%s302 + $0x28] sm:$0xff]
        %v369 = vld [vmem:[%s302 + $0x30] sm:$0xff]
        %v370 = vld [vmem:[%s302 + $0x38] sm:$0xff]
        %v371 = vld [vmem:[%s302 + $0x40] sm:$0xff]
        %v372 = vld [vmem:[%s302 + $0x48] sm:$0xff]
        %v373 = vld [vmem:[%s302 + $0x50] sm:$0xff]
        %v374 = vld [vmem:[%s302 + $0x58] sm:$0xff]
        %v375 = vld [vmem:[%s302 + $0x60] sm:$0xff]
        %v376 = vld [vmem:[%s302 + $0x68] sm:$0xff]
        %v377 = vld [vmem:[%s302 + $0x70] sm:$0xff]
        %v378 = vld [vmem:[%s302 + $0x78] sm:$0xff]
        %v379 = vld [vmem:[%s311] sm:$0xff]
        %v380 = vld [vmem:[%s311 + $0x8] sm:$0xff]
        %v381 = vld [vmem:[%s311 + $0x10] sm:$0xff]
        %v382 = vld [vmem:[%s311 + $0x18] sm:$0xff]
        %v383 = vld [vmem:[%s311 + $0x20] sm:$0xff]
        %v384 = vld [vmem:[%s311 + $0x28] sm:$0xff]
        %v385 = vld [vmem:[%s311 + $0x30] sm:$0xff]
        %v386 = vld [vmem:[%s311 + $0x38] sm:$0xff]
        %v387 = vld [vmem:[%s311 + $0x40] sm:$0xff]
        %v388 = vld [vmem:[%s311 + $0x48] sm:$0xff]
        %v389 = vld [vmem:[%s311 + $0x50] sm:$0xff]
        %v390 = vld [vmem:[%s311 + $0x58] sm:$0xff]
        %v391 = vld [vmem:[%s311 + $0x60] sm:$0xff]
        %v392 = vld [vmem:[%s311 + $0x68] sm:$0xff]
        %v393 = vld [vmem:[%s311 + $0x70] sm:$0xff]
        %v394 = vld [vmem:[%s311 + $0x78] sm:$0xff]
        %v395 = vadd.f32 %v363, %v379
        %v396 = vadd.f32 %v364, %v380
        %v397 = vadd.f32 %v365, %v381
        %v398 = vadd.f32 %v366, %v382
        %v399 = vadd.f32 %v367, %v383
        %v400 = vadd.f32 %v368, %v384
        %v401 = vadd.f32 %v369, %v385
        %v402 = vadd.f32 %v370, %v386
        %v403 = vadd.f32 %v371, %v387
        %v404 = vadd.f32 %v372, %v388
        %v405 = vadd.f32 %v373, %v389
        %v406 = vadd.f32 %v374, %v390
        %v407 = vadd.f32 %v375, %v391
        %v408 = vadd.f32 %v376, %v392
        %v409 = vadd.f32 %v377, %v393
        %v410 = vadd.f32 %v378, %v394
        %v411 = vld [vmem:[#allocation7 + $0x2] sm:$0x1]
        %v412 = vld [vmem:[#allocation7 + $0x3] sm:$0x1]
        %413 = vadd.xlane.f32.xlu0 %v395
        %v414 = vpop.xlane.xlu0 %413
        %415 = vadd.xlane.f32.xlu0 %v396
        %v416 = vpop.xlane.xlu0 %415
        %417 = vadd.xlane.f32.xlu0 %v397
        %v418 = vpop.xlane.xlu0 %417
        %419 = vadd.xlane.f32.xlu0 %v398
        %v420 = vpop.xlane.xlu0 %419
        %421 = vadd.xlane.f32.xlu0 %v399
        %v422 = vpop.xlane.xlu0 %421
        %423 = vadd.xlane.f32.xlu0 %v400
        %v424 = vpop.xlane.xlu0 %423
        %425 = vadd.xlane.f32.xlu0 %v401
        %v426 = vpop.xlane.xlu0 %425
        %427 = vadd.xlane.f32.xlu0 %v402
        %v428 = vpop.xlane.xlu0 %427
        %429 = vadd.xlane.f32.xlu0 %v403
        %v430 = vpop.xlane.xlu0 %429
        %431 = vadd.xlane.f32.xlu0 %v404
        %v432 = vpop.xlane.xlu0 %431
        %433 = vadd.xlane.f32.xlu0 %v405
        %v434 = vpop.xlane.xlu0 %433
        %435 = vadd.xlane.f32.xlu0 %v406
        %v436 = vpop.xlane.xlu0 %435
        %437 = vadd.xlane.f32.xlu0 %v407
        %v438 = vpop.xlane.xlu0 %437
        %439 = vadd.xlane.f32.xlu0 %v408
        %v440 = vpop.xlane.xlu0 %439
        %441 = vadd.xlane.f32.xlu0 %v409
        %v442 = vpop.xlane.xlu0 %441
        %443 = vadd.xlane.f32.xlu0 %v410
        %v444 = vpop.xlane.xlu0 %443
        %v445 = vrcp.pop 128.0
        %v446 = vmul.f32 %v414, %v445
        %v447 = vmul.f32 %v416, %v445
        %v448 = vmul.f32 %v418, %v445
        %v449 = vmul.f32 %v420, %v445
        %v450 = vmul.f32 %v422, %v445
        %v451 = vmul.f32 %v424, %v445
        %v452 = vmul.f32 %v426, %v445
        %v453 = vmul.f32 %v428, %v445
        %v454 = vmul.f32 %v430, %v445
        %v455 = vmul.f32 %v432, %v445
        %v456 = vmul.f32 %v434, %v445
        %v457 = vmul.f32 %v436, %v445
        %v458 = vmul.f32 %v438, %v445
        %v459 = vmul.f32 %v440, %v445
        %v460 = vmul.f32 %v442, %v445
        %v461 = vmul.f32 %v444, %v445
        %v462 = vsub.f32 %v395, %v446
        %v463 = vsub.f32 %v396, %v447
        %v464 = vsub.f32 %v397, %v448
        %v465 = vsub.f32 %v398, %v449
        %v466 = vsub.f32 %v399, %v450
        %v467 = vsub.f32 %v400, %v451
        %v468 = vsub.f32 %v401, %v452
        %v469 = vsub.f32 %v402, %v453
        %v470 = vsub.f32 %v403, %v454
        %v471 = vsub.f32 %v404, %v455
        %v472 = vsub.f32 %v405, %v456
        %v473 = vsub.f32 %v406, %v457
        %v474 = vsub.f32 %v407, %v458
        %v475 = vsub.f32 %v408, %v459
        %v476 = vsub.f32 %v409, %v460
        %v477 = vsub.f32 %v410, %v461
        %v478 = vmul.f32 %v462, %v462
        %v479 = vmul.f32 %v463, %v463
        %v480 = vmul.f32 %v464, %v464
        %v481 = vmul.f32 %v465, %v465
        %v482 = vmul.f32 %v466, %v466
        %v483 = vmul.f32 %v467, %v467
        %v484 = vmul.f32 %v468, %v468
        %v485 = vmul.f32 %v469, %v469
        %v486 = vmul.f32 %v470, %v470
        %v487 = vmul.f32 %v471, %v471
        %v488 = vmul.f32 %v472, %v472
        %v489 = vmul.f32 %v473, %v473
        %v490 = vmul.f32 %v474, %v474
        %v491 = vmul.f32 %v475, %v475
        %v492 = vmul.f32 %v476, %v476
        %v493 = vmul.f32 %v477, %v477
        %494 = vadd.xlane.f32.xlu0 %v478
        %v495 = vpop.xlane.xlu0 %494
        %496 = vadd.xlane.f32.xlu0 %v479
        %v497 = vpop.xlane.xlu0 %496
        %498 = vadd.xlane.f32.xlu0 %v480
        %v499 = vpop.xlane.xlu0 %498
        %500 = vadd.xlane.f32.xlu0 %v481
        %v501 = vpop.xlane.xlu0 %500
        %502 = vadd.xlane.f32.xlu0 %v482
        %v503 = vpop.xlane.xlu0 %502
        %504 = vadd.xlane.f32.xlu0 %v483
        %v505 = vpop.xlane.xlu0 %504
        %506 = vadd.xlane.f32.xlu0 %v484
        %v507 = vpop.xlane.xlu0 %506
        %508 = vadd.xlane.f32.xlu0 %v485
        %v509 = vpop.xlane.xlu0 %508
        %510 = vadd.xlane.f32.xlu0 %v486
        %v511 = vpop.xlane.xlu0 %510
        %512 = vadd.xlane.f32.xlu0 %v487
        %v513 = vpop.xlane.xlu0 %512
        %514 = vadd.xlane.f32.xlu0 %v488
        %v515 = vpop.xlane.xlu0 %514
        %516 = vadd.xlane.f32.xlu0 %v489
        %v517 = vpop.xlane.xlu0 %516
        %518 = vadd.xlane.f32.xlu0 %v490
        %v519 = vpop.xlane.xlu0 %518
        %520 = vadd.xlane.f32.xlu0 %v491
        %v521 = vpop.xlane.xlu0 %520
        %522 = vadd.xlane.f32.xlu0 %v492
        %v523 = vpop.xlane.xlu0 %522
        %524 = vadd.xlane.f32.xlu0 %v493
        %v525 = vpop.xlane.xlu0 %524
        %v526 = vmul.f32 %v495, %v445
        %v527 = vmul.f32 %v497, %v445
        %v528 = vmul.f32 %v499, %v445
        %v529 = vmul.f32 %v501, %v445
        %v530 = vmul.f32 %v503, %v445
        %v531 = vmul.f32 %v505, %v445
        %v532 = vmul.f32 %v507, %v445
        %v533 = vmul.f32 %v509, %v445
        %v534 = vmul.f32 %v511, %v445
        %v535 = vmul.f32 %v513, %v445
        %v536 = vmul.f32 %v515, %v445
        %v537 = vmul.f32 %v517, %v445
        %v538 = vmul.f32 %v519, %v445
        %v539 = vmul.f32 %v521, %v445
        %v540 = vmul.f32 %v523, %v445
        %v541 = vmul.f32 %v525, %v445
        %v542 = vadd.f32 %v526, 1e-05
        %v543 = vadd.f32 %v527, 1e-05
        %v544 = vadd.f32 %v528, 1e-05
        %v545 = vadd.f32 %v529, 1e-05
        %v546 = vadd.f32 %v530, 1e-05
        %v547 = vadd.f32 %v531, 1e-05
        %v548 = vadd.f32 %v532, 1e-05
        %v549 = vadd.f32 %v533, 1e-05
        %v550 = vadd.f32 %v534, 1e-05
        %v551 = vadd.f32 %v535, 1e-05
        %v552 = vadd.f32 %v536, 1e-05
        %v553 = vadd.f32 %v537, 1e-05
        %v554 = vadd.f32 %v538, 1e-05
        %v555 = vadd.f32 %v539, 1e-05
        %v556 = vadd.f32 %v540, 1e-05
        %v557 = vadd.f32 %v541, 1e-05
        %v558 = vrsqrt.pop %v542
        %v559 = vrsqrt.pop %v543
        %v560 = vrsqrt.pop %v544
        %v561 = vrsqrt.pop %v545
        %v562 = vrsqrt.pop %v546
        %v563 = vrsqrt.pop %v547
        %v564 = vrsqrt.pop %v548
        %v565 = vrsqrt.pop %v549
        %v566 = vrsqrt.pop %v550
        %v567 = vrsqrt.pop %v551
        %v568 = vrsqrt.pop %v552
        %v569 = vrsqrt.pop %v553
        %v570 = vrsqrt.pop %v554
        %v571 = vrsqrt.pop %v555
        %v572 = vrsqrt.pop %v556
        %v573 = vrsqrt.pop %v557
        %v574 = vmul.f32 %v462, %v558
        %v575 = vmul.f32 %v463, %v559
        %v576 = vmul.f32 %v464, %v560
        %v577 = vmul.f32 %v465, %v561
        %v578 = vmul.f32 %v466, %v562
        %v579 = vmul.f32 %v467, %v563
        %v580 = vmul.f32 %v468, %v564
        %v581 = vmul.f32 %v469, %v565
        %v582 = vmul.f32 %v470, %v566
        %v583 = vmul.f32 %v471, %v567
        %v584 = vmul.f32 %v472, %v568
        %v585 = vmul.f32 %v473, %v569
        %v586 = vmul.f32 %v474, %v570
        %v587 = vmul.f32 %v475, %v571
        %v588 = vmul.f32 %v476, %v572
        %v589 = vmul.f32 %v477, %v573
        %v590 = vlaneseq
        %v591 = vshrl.u32 %v590, 7
        %v592 = vsub.s32 0, %v591
        %v593 = vrot.slane %v411, %v592
        %v594 = vmul.f32 %v574, %v593
        %v595 = vmul.f32 %v575, %v593
        %v596 = vmul.f32 %v576, %v593
        %v597 = vmul.f32 %v577, %v593
        %v598 = vmul.f32 %v578, %v593
        %v599 = vmul.f32 %v579, %v593
        %v600 = vmul.f32 %v580, %v593
        %v601 = vmul.f32 %v581, %v593
        %v602 = vmul.f32 %v582, %v593
        %v603 = vmul.f32 %v583, %v593
        %v604 = vmul.f32 %v584, %v593
        %v605 = vmul.f32 %v585, %v593
        %v606 = vmul.f32 %v586, %v593
        %v607 = vmul.f32 %v587, %v593
        %v608 = vmul.f32 %v588, %v593
        %v609 = vmul.f32 %v589, %v593
        %v610 = vlaneseq
        %v611 = vshrl.u32 %v610, 7
        %v612 = vsub.s32 0, %v611
        %v613 = vrot.slane %v412, %v612
        %v614 = vadd.f32 %v594, %v613
        %v615 = vadd.f32 %v595, %v613
        %v616 = vadd.f32 %v596, %v613
        %v617 = vadd.f32 %v597, %v613
        %v618 = vadd.f32 %v598, %v613
        %v619 = vadd.f32 %v599, %v613
        %v620 = vadd.f32 %v600, %v613
        %v621 = vadd.f32 %v601, %v613
        %v622 = vadd.f32 %v602, %v613
        %v623 = vadd.f32 %v603, %v613
        %v624 = vadd.f32 %v604, %v613
        %v625 = vadd.f32 %v605, %v613
        %v626 = vadd.f32 %v606, %v613
        %v627 = vadd.f32 %v607, %v613
        %v628 = vadd.f32 %v608, %v613
        %v629 = vadd.f32 %v609, %v613
        %v630 = vpack.c.bf16 %v615, %v614
        %v631 = vpack.c.bf16 %v617, %v616
        %v632 = vpack.c.bf16 %v619, %v618
        %v633 = vpack.c.bf16 %v621, %v620
        %v634 = vpack.c.bf16 %v623, %v622
        %v635 = vpack.c.bf16 %v625, %v624
        %v636 = vpack.c.bf16 %v627, %v626
        %v637 = vpack.c.bf16 %v629, %v628
        %v638 = vld [vmem:[#allocation7 + $0x4] sm:$0x1]
        %v639 = vld [vmem:[#allocation7 + $0x5] sm:$0x1]
        %640 = vadd.xlane.f32.xlu0 %v363
        %v641 = vpop.xlane.xlu0 %640
        %642 = vadd.xlane.f32.xlu0 %v364
        %v643 = vpop.xlane.xlu0 %642
        %644 = vadd.xlane.f32.xlu0 %v365
        %v645 = vpop.xlane.xlu0 %644
        %646 = vadd.xlane.f32.xlu0 %v366
        %v647 = vpop.xlane.xlu0 %646
        %648 = vadd.xlane.f32.xlu0 %v367
        %v649 = vpop.xlane.xlu0 %648
        %650 = vadd.xlane.f32.xlu0 %v368
        %v651 = vpop.xlane.xlu0 %650
        %652 = vadd.xlane.f32.xlu0 %v369
        %v653 = vpop.xlane.xlu0 %652
        %654 = vadd.xlane.f32.xlu0 %v370
        %v655 = vpop.xlane.xlu0 %654
        %656 = vadd.xlane.f32.xlu0 %v371
        %v657 = vpop.xlane.xlu0 %656
        %658 = vadd.xlane.f32.xlu0 %v372
        %v659 = vpop.xlane.xlu0 %658
        %660 = vadd.xlane.f32.xlu0 %v373
        %v661 = vpop.xlane.xlu0 %660
        %662 = vadd.xlane.f32.xlu0 %v374
        %v663 = vpop.xlane.xlu0 %662
        %664 = vadd.xlane.f32.xlu0 %v375
        %v665 = vpop.xlane.xlu0 %664
        %666 = vadd.xlane.f32.xlu0 %v376
        %v667 = vpop.xlane.xlu0 %666
        %668 = vadd.xlane.f32.xlu0 %v377
        %v669 = vpop.xlane.xlu0 %668
        %670 = vadd.xlane.f32.xlu0 %v378
        %v671 = vpop.xlane.xlu0 %670
        %v672 = vmul.f32 %v641, %v445
        %v673 = vmul.f32 %v643, %v445
        %v674 = vmul.f32 %v645, %v445
        %v675 = vmul.f32 %v647, %v445
        %v676 = vmul.f32 %v649, %v445
        %v677 = vmul.f32 %v651, %v445
        %v678 = vmul.f32 %v653, %v445
        %v679 = vmul.f32 %v655, %v445
        %v680 = vmul.f32 %v657, %v445
        %v681 = vmul.f32 %v659, %v445
        %v682 = vmul.f32 %v661, %v445
        %v683 = vmul.f32 %v663, %v445
        %v684 = vmul.f32 %v665, %v445
        %v685 = vmul.f32 %v667, %v445
        %v686 = vmul.f32 %v669, %v445
        %v687 = vmul.f32 %v671, %v445
        %v688 = vsub.f32 %v363, %v672
        %v689 = vsub.f32 %v364, %v673
        %v690 = vsub.f32 %v365, %v674
        %v691 = vsub.f32 %v366, %v675
        %v692 = vsub.f32 %v367, %v676
        %v693 = vsub.f32 %v368, %v677
        %v694 = vsub.f32 %v369, %v678
        %v695 = vsub.f32 %v370, %v679
        %v696 = vsub.f32 %v371, %v680
        %v697 = vsub.f32 %v372, %v681
        %v698 = vsub.f32 %v373, %v682
        %v699 = vsub.f32 %v374, %v683
        %v700 = vsub.f32 %v375, %v684
        %v701 = vsub.f32 %v376, %v685
        %v702 = vsub.f32 %v377, %v686
        %v703 = vsub.f32 %v378, %v687
        %v704 = vmul.f32 %v688, %v688
        %v705 = vmul.f32 %v689, %v689
        %v706 = vmul.f32 %v690, %v690
        %v707 = vmul.f32 %v691, %v691
        %v708 = vmul.f32 %v692, %v692
        %v709 = vmul.f32 %v693, %v693
        %v710 = vmul.f32 %v694, %v694
        %v711 = vmul.f32 %v695, %v695
        %v712 = vmul.f32 %v696, %v696
        %v713 = vmul.f32 %v697, %v697
        %v714 = vmul.f32 %v698, %v698
        %v715 = vmul.f32 %v699, %v699
        %v716 = vmul.f32 %v700, %v700
        %v717 = vmul.f32 %v701, %v701
        %v718 = vmul.f32 %v702, %v702
        %v719 = vmul.f32 %v703, %v703
        %720 = vadd.xlane.f32.xlu0 %v704
        %v721 = vpop.xlane.xlu0 %720
        %722 = vadd.xlane.f32.xlu0 %v705
        %v723 = vpop.xlane.xlu0 %722
        %724 = vadd.xlane.f32.xlu0 %v706
        %v725 = vpop.xlane.xlu0 %724
        %726 = vadd.xlane.f32.xlu0 %v707
        %v727 = vpop.xlane.xlu0 %726
        %728 = vadd.xlane.f32.xlu0 %v708
        %v729 = vpop.xlane.xlu0 %728
        %730 = vadd.xlane.f32.xlu0 %v709
        %v731 = vpop.xlane.xlu0 %730
        %732 = vadd.xlane.f32.xlu0 %v710
        %v733 = vpop.xlane.xlu0 %732
        %734 = vadd.xlane.f32.xlu0 %v711
        %v735 = vpop.xlane.xlu0 %734
        %736 = vadd.xlane.f32.xlu0 %v712
        %v737 = vpop.xlane.xlu0 %736
        %738 = vadd.xlane.f32.xlu0 %v713
        %v739 = vpop.xlane.xlu0 %738
        %740 = vadd.xlane.f32.xlu0 %v714
        %v741 = vpop.xlane.xlu0 %740
        %742 = vadd.xlane.f32.xlu0 %v715
        %v743 = vpop.xlane.xlu0 %742
        %744 = vadd.xlane.f32.xlu0 %v716
        %v745 = vpop.xlane.xlu0 %744
        %746 = vadd.xlane.f32.xlu0 %v717
        %v747 = vpop.xlane.xlu0 %746
        %748 = vadd.xlane.f32.xlu0 %v718
        %v749 = vpop.xlane.xlu0 %748
        %750 = vadd.xlane.f32.xlu0 %v719
        %v751 = vpop.xlane.xlu0 %750
        %v752 = vmul.f32 %v721, %v445
        %v753 = vmul.f32 %v723, %v445
        %v754 = vmul.f32 %v725, %v445
        %v755 = vmul.f32 %v727, %v445
        %v756 = vmul.f32 %v729, %v445
        %v757 = vmul.f32 %v731, %v445
        %v758 = vmul.f32 %v733, %v445
        %v759 = vmul.f32 %v735, %v445
        %v760 = vmul.f32 %v737, %v445
        %v761 = vmul.f32 %v739, %v445
        %v762 = vmul.f32 %v741, %v445
        %v763 = vmul.f32 %v743, %v445
        %v764 = vmul.f32 %v745, %v445
        %v765 = vmul.f32 %v747, %v445
        %v766 = vmul.f32 %v749, %v445
        %v767 = vmul.f32 %v751, %v445
        %v768 = vadd.f32 %v752, 1e-05
        %v769 = vadd.f32 %v753, 1e-05
        %v770 = vadd.f32 %v754, 1e-05
        %v771 = vadd.f32 %v755, 1e-05
        %v772 = vadd.f32 %v756, 1e-05
        %v773 = vadd.f32 %v757, 1e-05
        %v774 = vadd.f32 %v758, 1e-05
        %v775 = vadd.f32 %v759, 1e-05
        %v776 = vadd.f32 %v760, 1e-05
        %v777 = vadd.f32 %v761, 1e-05
        %v778 = vadd.f32 %v762, 1e-05
        %v779 = vadd.f32 %v763, 1e-05
        %v780 = vadd.f32 %v764, 1e-05
        %v781 = vadd.f32 %v765, 1e-05
        %v782 = vadd.f32 %v766, 1e-05
        %v783 = vadd.f32 %v767, 1e-05
        %v784 = vrsqrt.pop %v768
        %v785 = vrsqrt.pop %v769
        %v786 = vrsqrt.pop %v770
        %v787 = vrsqrt.pop %v771
        %v788 = vrsqrt.pop %v772
        %v789 = vrsqrt.pop %v773
        %v790 = vrsqrt.pop %v774
        %v791 = vrsqrt.pop %v775
        %v792 = vrsqrt.pop %v776
        %v793 = vrsqrt.pop %v777
        %v794 = vrsqrt.pop %v778
        %v795 = vrsqrt.pop %v779
        %v796 = vrsqrt.pop %v780
        %v797 = vrsqrt.pop %v781
        %v798 = vrsqrt.pop %v782
        %v799 = vrsqrt.pop %v783
        %v800 = vmul.f32 %v688, %v784
        %v801 = vmul.f32 %v689, %v785
        %v802 = vmul.f32 %v690, %v786
        %v803 = vmul.f32 %v691, %v787
        %v804 = vmul.f32 %v692, %v788
        %v805 = vmul.f32 %v693, %v789
        %v806 = vmul.f32 %v694, %v790
        %v807 = vmul.f32 %v695, %v791
        %v808 = vmul.f32 %v696, %v792
        %v809 = vmul.f32 %v697, %v793
        %v810 = vmul.f32 %v698, %v794
        %v811 = vmul.f32 %v699, %v795
        %v812 = vmul.f32 %v700, %v796
        %v813 = vmul.f32 %v701, %v797
        %v814 = vmul.f32 %v702, %v798
        %v815 = vmul.f32 %v703, %v799
        %v816 = vlaneseq
        %v817 = vshrl.u32 %v816, 7
        %v818 = vsub.s32 0, %v817
        %v819 = vrot.slane %v638, %v818
        %v820 = vmul.f32 %v800, %v819
        %v821 = vmul.f32 %v801, %v819
        %v822 = vmul.f32 %v802, %v819
        %v823 = vmul.f32 %v803, %v819
        %v824 = vmul.f32 %v804, %v819
        %v825 = vmul.f32 %v805, %v819
        %v826 = vmul.f32 %v806, %v819
        %v827 = vmul.f32 %v807, %v819
        %v828 = vmul.f32 %v808, %v819
        %v829 = vmul.f32 %v809, %v819
        %v830 = vmul.f32 %v810, %v819
        %v831 = vmul.f32 %v811, %v819
        %v832 = vmul.f32 %v812, %v819
        %v833 = vmul.f32 %v813, %v819
        %v834 = vmul.f32 %v814, %v819
        %v835 = vmul.f32 %v815, %v819
        %v836 = vlaneseq
        %v837 = vshrl.u32 %v836, 7
        %v838 = vsub.s32 0, %v837
        %v839 = vrot.slane %v639, %v838
        %v840 = vadd.f32 %v820, %v839
        %v841 = vadd.f32 %v821, %v839
        %v842 = vadd.f32 %v822, %v839
        %v843 = vadd.f32 %v823, %v839
        %v844 = vadd.f32 %v824, %v839
        %v845 = vadd.f32 %v825, %v839
        %v846 = vadd.f32 %v826, %v839
        %v847 = vadd.f32 %v827, %v839
        %v848 = vadd.f32 %v828, %v839
        %v849 = vadd.f32 %v829, %v839
        %v850 = vadd.f32 %v830, %v839
        %v851 = vadd.f32 %v831, %v839
        %v852 = vadd.f32 %v832, %v839
        %v853 = vadd.f32 %v833, %v839
        %v854 = vadd.f32 %v834, %v839
        %v855 = vadd.f32 %v835, %v839
        %v856 = vpack.c.bf16 %v841, %v840
        %v857 = vpack.c.bf16 %v843, %v842
        %v858 = vpack.c.bf16 %v845, %v844
        %v859 = vpack.c.bf16 %v847, %v846
        %v860 = vpack.c.bf16 %v849, %v848
        %v861 = vpack.c.bf16 %v851, %v850
        %v862 = vpack.c.bf16 %v853, %v852
        %v863 = vpack.c.bf16 %v855, %v854
        %v864 = vld [vmem:[#allocation8] sm:$0xf]
        %v865 = vld [vmem:[#allocation8 + $0x4] sm:$0xf]
        %v866 = vld [vmem:[#allocation8 + $0x8] sm:$0xf]
        %v867 = vld [vmem:[#allocation8 + $0xc] sm:$0xf]
        %v868 = vld [vmem:[#allocation8 + $0x10] sm:$0xf]
        %v869 = vld [vmem:[#allocation8 + $0x14] sm:$0xf]
        %v870 = vld [vmem:[#allocation8 + $0x18] sm:$0xf]
        %v871 = vld [vmem:[#allocation8 + $0x1c] sm:$0xf]
        %v872 = vld [vmem:[#allocation8 + $0x20] sm:$0xf]
        %v873 = vld [vmem:[#allocation8 + $0x24] sm:$0xf]
        %v874 = vld [vmem:[#allocation8 + $0x28] sm:$0xf]
        %v875 = vld [vmem:[#allocation8 + $0x2c] sm:$0xf]
        %v876 = vld [vmem:[#allocation8 + $0x30] sm:$0xf]
        %v877 = vld [vmem:[#allocation8 + $0x34] sm:$0xf]
        %v878 = vld [vmem:[#allocation8 + $0x38] sm:$0xf]
        %v879 = vld [vmem:[#allocation8 + $0x3c] sm:$0xf]
        %v896 = vunpack.c.l.b16 %v864
        %v897 = vunpack.c.l.b16 %v865
        %v898 = vunpack.c.l.b16 %v866
        %v899 = vunpack.c.l.b16 %v867
        %v900 = vunpack.c.l.b16 %v868
        %v901 = vunpack.c.l.b16 %v869
        %v902 = vunpack.c.l.b16 %v870
        %v903 = vunpack.c.l.b16 %v871
        %v904 = vunpack.c.l.b16 %v872
        %v905 = vunpack.c.l.b16 %v873
        %v906 = vunpack.c.l.b16 %v874
        %v907 = vunpack.c.l.b16 %v875
        %v908 = vunpack.c.l.b16 %v876
        %v909 = vunpack.c.l.b16 %v877
        %v910 = vunpack.c.l.b16 %v878
        %v911 = vunpack.c.l.b16 %v879
        %v912 = vpack.c.b16 %v897, %v896
        %v913 = vpack.c.b16 %v899, %v898
        %v914 = vpack.c.b16 %v901, %v900
        %v915 = vpack.c.b16 %v903, %v902
        %v916 = vpack.c.b16 %v905, %v904
        %v917 = vpack.c.b16 %v907, %v906
        %v918 = vpack.c.b16 %v909, %v908
        %v919 = vpack.c.b16 %v911, %v910
        %928 = vxpose.xlu0.c.b16.start [1/8] %v912, 128
        %929 = vxpose.xlu0.c.b16.cont [2/8] %v913, 128
        %930 = vxpose.xlu0.c.b16.cont [3/8] %v914, 128
        %931 = vxpose.xlu0.c.b16.cont [4/8] %v915, 128
        %932 = vxpose.xlu0.c.b16.cont [5/8] %v916, 128
        %933 = vxpose.xlu0.c.b16.cont [6/8] %v917, 128
        %934 = vxpose.xlu0.c.b16.cont [7/8] %v918, 128
        %935 = vxpose.xlu0.c.b16.end [8/8] %v919, 128
        %v936 = vpop.trf.xlu0
        %v937 = vpop.trf.xlu0
        %v938 = vpop.trf.xlu0
        %v939 = vpop.trf.xlu0
        %v940 = vpop.trf.xlu0
        %v941 = vpop.trf.xlu0
        %v942 = vpop.trf.xlu0
        %v943 = vpop.trf.xlu0
        %944 = vmatprep.subr.bf16.mxu0 0
        %945 = vmatpush1.bf16.xpose.msra.mxu0 %v630
        %946 = vmatprep.subr.bf16.mxu0 0
        %947 = vmatpush1.bf16.xpose.msra.mxu0 %v631
        %948 = vmatprep.subr.bf16.mxu0 0
        %949 = vmatpush1.bf16.xpose.msra.mxu0 %v632
        %950 = vmatprep.subr.bf16.mxu0 0
        %951 = vmatpush1.bf16.xpose.msra.mxu0 %v633
        %952 = vmatprep.subr.bf16.mxu0 0
        %953 = vmatpush1.bf16.xpose.msra.mxu0 %v634
        %954 = vmatprep.subr.bf16.mxu0 0
        %955 = vmatpush1.bf16.xpose.msra.mxu0 %v635
        %956 = vmatprep.subr.bf16.mxu0 0
        %957 = vmatpush1.bf16.xpose.msra.mxu0 %v636
        %958 = vmatprep.subr.bf16.mxu0 0
        %959 = vmatpush1.bf16.xpose.msra.mxu0 %v637
        %960 = vmatprep.subr.bf16.mxu0 0
        %961 = vmatpush1.bf16.xpose.msra.mxu0 0
        %962 = vmatprep.subr.bf16.mxu0 0
        %963 = vmatpush1.bf16.xpose.msra.mxu0 0
        %964 = vmatprep.subr.bf16.mxu0 0
        %965 = vmatpush1.bf16.xpose.msra.mxu0 0
        %966 = vmatprep.subr.bf16.mxu0 0
        %967 = vmatpush1.bf16.xpose.msra.mxu0 0
        %968 = vmatprep.subr.bf16.mxu0 0
        %969 = vmatpush1.bf16.xpose.msra.mxu0 0
        %970 = vmatprep.subr.bf16.mxu0 0
        %971 = vmatpush1.bf16.xpose.msra.mxu0 0
        %972 = vmatprep.subr.bf16.mxu0 0
        %973 = vmatpush1.bf16.xpose.msra.mxu0 0
        %974 = vmatprep.subr.bf16.mxu0 0
        %975 = vmatpush1.bf16.xpose.msra.mxu0 0
        %976 = vmatprep.mubr.bf16.mxu0 0
        %977 = vmatmul.mubr.bf16.gmra.mrb[0].mxu0 %v936
        %v978 = vpop.f32.mrb[0].mxu0
        %v979 = vadd.f32 0.0, %v978
        %v980 = vpop.f32.mrb[0].mxu0
        %v981 = vpop.f32.mrb[0].mxu0
        %v982 = vadd.f32 0.0, %v981
        %v983 = vpop.f32.mrb[0].mxu0
        %984 = vmatprep.mubr.bf16.mxu0 0
        %985 = vmatmul.mubr.bf16.gmra.mrb[0].mxu0 %v937
        %v986 = vpop.f32.mrb[0].mxu0
        %v987 = vadd.f32 0.0, %v986
        %v988 = vpop.f32.mrb[0].mxu0
        %v989 = vpop.f32.mrb[0].mxu0
        %v990 = vadd.f32 0.0, %v989
        %v991 = vpop.f32.mrb[0].mxu0
        %992 = vmatprep.mubr.bf16.mxu0 0
        %993 = vmatmul.mubr.bf16.gmra.mrb[0].mxu0 %v938
        %v994 = vpop.f32.mrb[0].mxu0
        %v995 = vadd.f32 0.0, %v994
        %v996 = vpop.f32.mrb[0].mxu0
        %v997 = vpop.f32.mrb[0].mxu0
        %v998 = vadd.f32 0.0, %v997
        %v999 = vpop.f32.mrb[0].mxu0
        %1000 = vmatprep.mubr.bf16.mxu0 0
        %1001 = vmatmul.mubr.bf16.gmra.mrb[0].mxu0 %v939
        %v1002 = vpop.f32.mrb[0].mxu0
        %v1003 = vadd.f32 0.0, %v1002
        %v1004 = vpop.f32.mrb[0].mxu0
        %v1005 = vpop.f32.mrb[0].mxu0
        %v1006 = vadd.f32 0.0, %v1005
        %v1007 = vpop.f32.mrb[0].mxu0
        %1008 = vmatprep.mubr.bf16.mxu0 0
        %1009 = vmatmul.mubr.bf16.gmra.mrb[0].mxu0 %v940
        %v1010 = vpop.f32.mrb[0].mxu0
        %v1011 = vadd.f32 0.0, %v1010
        %v1012 = vpop.f32.mrb[0].mxu0
        %v1013 = vpop.f32.mrb[0].mxu0
        %v1014 = vadd.f32 0.0, %v1013
        %v1015 = vpop.f32.mrb[0].mxu0
        %1016 = vmatprep.mubr.bf16.mxu0 0
        %1017 = vmatmul.mubr.bf16.gmra.mrb[0].mxu0 %v941
        %v1018 = vpop.f32.mrb[0].mxu0
        %v1019 = vadd.f32 0.0, %v1018
        %v1020 = vpop.f32.mrb[0].mxu0
        %v1021 = vpop.f32.mrb[0].mxu0
        %v1022 = vadd.f32 0.0, %v1021
        %v1023 = vpop.f32.mrb[0].mxu0
        %1024 = vmatprep.mubr.bf16.mxu0 0
        %1025 = vmatmul.mubr.bf16.gmra.mrb[0].mxu0 %v942
        %v1026 = vpop.f32.mrb[0].mxu0
        %v1027 = vadd.f32 0.0, %v1026
        %v1028 = vpop.f32.mrb[0].mxu0
        %v1029 = vpop.f32.mrb[0].mxu0
        %v1030 = vadd.f32 0.0, %v1029
        %v1031 = vpop.f32.mrb[0].mxu0
        %1032 = vmatprep.mubr.bf16.mxu0 0
        %1033 = vmatmul.mubr.bf16.gmra.mrb[0].mxu0 %v943
        %v1034 = vpop.f32.mrb[0].mxu0
        %v1035 = vadd.f32 0.0, %v1034
        %v1036 = vpop.f32.mrb[0].mxu0
        %v1037 = vpop.f32.mrb[0].mxu0
        %v1038 = vadd.f32 0.0, %v1037
        %v1039 = vpop.f32.mrb[0].mxu0
        %1040 = vdwg.mxu0
        %v1041 = vpack.c.bf16 %v982, %v979
        %v1042 = vpack.c.bf16 %v990, %v987
        %v1043 = vpack.c.bf16 %v998, %v995
        %v1044 = vpack.c.bf16 %v1006, %v1003
        %v1045 = vpack.c.bf16 %v1014, %v1011
        %v1046 = vpack.c.bf16 %v1022, %v1019
        %v1047 = vpack.c.bf16 %v1030, %v1027
        %v1048 = vpack.c.bf16 %v1038, %v1035
        %v1057 = vunpack.c.l.b16 %v1041
        %v1058 = vunpack.c.h.b16 %v1041
        %v1059 = vunpack.c.l.b16 %v1042
        %v1060 = vunpack.c.h.b16 %v1042
        %v1061 = vunpack.c.l.b16 %v1043
        %v1062 = vunpack.c.h.b16 %v1043
        %v1063 = vunpack.c.l.b16 %v1044
        %v1064 = vunpack.c.h.b16 %v1044
        %v1065 = vunpack.c.l.b16 %v1045
        %v1066 = vunpack.c.h.b16 %v1045
        %v1067 = vunpack.c.l.b16 %v1046
        %v1068 = vunpack.c.h.b16 %v1046
        %v1069 = vunpack.c.l.b16 %v1047
        %v1070 = vunpack.c.h.b16 %v1047
        %v1071 = vunpack.c.l.b16 %v1048
        %v1072 = vunpack.c.h.b16 %v1048
        %v1073 = vpack.c.b16 %v1057, %v1057
        %v1074 = vpack.c.b16 %v1058, %v1058
        %v1075 = vpack.c.b16 %v1059, %v1059
        %v1076 = vpack.c.b16 %v1060, %v1060
        %v1077 = vpack.c.b16 %v1061, %v1061
        %v1078 = vpack.c.b16 %v1062, %v1062
        %v1079 = vpack.c.b16 %v1063, %v1063
        %v1080 = vpack.c.b16 %v1064, %v1064
        %v1081 = vpack.c.b16 %v1065, %v1065
        %v1082 = vpack.c.b16 %v1066, %v1066
        %v1083 = vpack.c.b16 %v1067, %v1067
        %v1084 = vpack.c.b16 %v1068, %v1068
        %v1085 = vpack.c.b16 %v1069, %v1069
        %v1086 = vpack.c.b16 %v1070, %v1070
        %v1087 = vpack.c.b16 %v1071, %v1071
        %v1088 = vpack.c.b16 %v1072, %v1072
        %1105 = vst [vmem:[%s354] sm:$0xf] %v1073
        %1106 = vst [vmem:[%s354 + $0x4] sm:$0xf] %v1074
        %1107 = vst [vmem:[%s354 + $0x8] sm:$0xf] %v1075
        %1108 = vst [vmem:[%s354 + $0xc] sm:$0xf] %v1076
        %1109 = vst [vmem:[%s354 + $0x10] sm:$0xf] %v1077
        %1110 = vst [vmem:[%s354 + $0x14] sm:$0xf] %v1078
        %1111 = vst [vmem:[%s354 + $0x18] sm:$0xf] %v1079
        %1112 = vst [vmem:[%s354 + $0x1c] sm:$0xf] %v1080
        %1113 = vst [vmem:[%s354 + $0x20] sm:$0xf] %v1081
        %1114 = vst [vmem:[%s354 + $0x24] sm:$0xf] %v1082
        %1115 = vst [vmem:[%s354 + $0x28] sm:$0xf] %v1083
        %1116 = vst [vmem:[%s354 + $0x2c] sm:$0xf] %v1084
        %1117 = vst [vmem:[%s354 + $0x30] sm:$0xf] %v1085
        %1118 = vst [vmem:[%s354 + $0x34] sm:$0xf] %v1086
        %1119 = vst [vmem:[%s354 + $0x38] sm:$0xf] %v1087
        %1120 = vst [vmem:[%s354 + $0x3c] sm:$0xf] %v1088
        %v1121 = vld [vmem:[#allocation10] sm:$0xf]
        %v1122 = vld [vmem:[#allocation10 + $0x4] sm:$0xf]
        %v1123 = vld [vmem:[#allocation10 + $0x8] sm:$0xf]
        %v1124 = vld [vmem:[#allocation10 + $0xc] sm:$0xf]
        %v1125 = vld [vmem:[#allocation10 + $0x10] sm:$0xf]
        %v1126 = vld [vmem:[#allocation10 + $0x14] sm:$0xf]
        %v1127 = vld [vmem:[#allocation10 + $0x18] sm:$0xf]
        %v1128 = vld [vmem:[#allocation10 + $0x1c] sm:$0xf]
        %v1129 = vld [vmem:[#allocation10 + $0x20] sm:$0xf]
        %v1130 = vld [vmem:[#allocation10 + $0x24] sm:$0xf]
        %v1131 = vld [vmem:[#allocation10 + $0x28] sm:$0xf]
        %v1132 = vld [vmem:[#allocation10 + $0x2c] sm:$0xf]
        %v1133 = vld [vmem:[#allocation10 + $0x30] sm:$0xf]
        %v1134 = vld [vmem:[#allocation10 + $0x34] sm:$0xf]
        %v1135 = vld [vmem:[#allocation10 + $0x38] sm:$0xf]
        %v1136 = vld [vmem:[#allocation10 + $0x3c] sm:$0xf]
        %v1153 = vunpack.c.l.b16 %v1121
        %v1154 = vunpack.c.l.b16 %v1122
        %v1155 = vunpack.c.l.b16 %v1123
        %v1156 = vunpack.c.l.b16 %v1124
        %v1157 = vunpack.c.l.b16 %v1125
        %v1158 = vunpack.c.l.b16 %v1126
        %v1159 = vunpack.c.l.b16 %v1127
        %v1160 = vunpack.c.l.b16 %v1128
        %v1161 = vunpack.c.l.b16 %v1129
        %v1162 = vunpack.c.l.b16 %v1130
        %v1163 = vunpack.c.l.b16 %v1131
        %v1164 = vunpack.c.l.b16 %v1132
        %v1165 = vunpack.c.l.b16 %v1133
        %v1166 = vunpack.c.l.b16 %v1134
        %v1167 = vunpack.c.l.b16 %v1135
        %v1168 = vunpack.c.l.b16 %v1136
        %v1169 = vpack.c.b16 %v1154, %v1153
        %v1170 = vpack.c.b16 %v1156, %v1155
        %v1171 = vpack.c.b16 %v1158, %v1157
        %v1172 = vpack.c.b16 %v1160, %v1159
        %v1173 = vpack.c.b16 %v1162, %v1161
        %v1174 = vpack.c.b16 %v1164, %v1163
        %v1175 = vpack.c.b16 %v1166, %v1165
        %v1176 = vpack.c.b16 %v1168, %v1167
        %1185 = vmatprep.subr.bf16.mxu0 0
        %1186 = vmatpush1.bf16.msra.mxu0 %v1169
        %1187 = vmatprep.subr.bf16.mxu0 0
        %1188 = vmatpush1.bf16.msra.mxu0 %v1170
        %1189 = vmatprep.subr.bf16.mxu0 0
        %1190 = vmatpush1.bf16.msra.mxu0 %v1171
        %1191 = vmatprep.subr.bf16.mxu0 0
        %1192 = vmatpush1.bf16.msra.mxu0 %v1172
        %1193 = vmatprep.subr.bf16.mxu0 0
        %1194 = vmatpush1.bf16.msra.mxu0 %v1173
        %1195 = vmatprep.subr.bf16.mxu0 0
        %1196 = vmatpush1.bf16.msra.mxu0 %v1174
        %1197 = vmatprep.subr.bf16.mxu0 0
        %1198 = vmatpush1.bf16.msra.mxu0 %v1175
        %1199 = vmatprep.subr.bf16.mxu0 0
        %1200 = vmatpush1.bf16.msra.mxu0 %v1176
        %1201 = vmatprep.subr.bf16.mxu0 0
        %1202 = vmatpush1.bf16.msra.mxu0 0
        %1203 = vmatprep.subr.bf16.mxu0 0
        %1204 = vmatpush1.bf16.msra.mxu0 0
        %1205 = vmatprep.subr.bf16.mxu0 0
        %1206 = vmatpush1.bf16.msra.mxu0 0
        %1207 = vmatprep.subr.bf16.mxu0 0
        %1208 = vmatpush1.bf16.msra.mxu0 0
        %1209 = vmatprep.subr.bf16.mxu0 0
        %1210 = vmatpush1.bf16.msra.mxu0 0
        %1211 = vmatprep.subr.bf16.mxu0 0
        %1212 = vmatpush1.bf16.msra.mxu0 0
        %1213 = vmatprep.subr.bf16.mxu0 0
        %1214 = vmatpush1.bf16.msra.mxu0 0
        %1215 = vmatprep.subr.bf16.mxu0 0
        %1216 = vmatpush1.bf16.msra.mxu0 0
        %1217 = vmatprep.mubr.bf16.mxu0 0
        %1218 = vmatmul.mubr.bf16.gmra.mrb[0].mxu0 %v856
        %v1219 = vpop.f32.mrb[0].mxu0
        %v1220 = vadd.f32 0.0, %v1219
        %v1221 = vpop.f32.mrb[0].mxu0
        %v1222 = vpop.f32.mrb[0].mxu0
        %v1223 = vadd.f32 0.0, %v1222
        %v1224 = vpop.f32.mrb[0].mxu0
        %1225 = vmatprep.mubr.bf16.mxu0 0
        %1226 = vmatmul.mubr.bf16.gmra.mrb[0].mxu0 %v857
        %v1227 = vpop.f32.mrb[0].mxu0
        %v1228 = vadd.f32 0.0, %v1227
        %v1229 = vpop.f32.mrb[0].mxu0
        %v1230 = vpop.f32.mrb[0].mxu0
        %v1231 = vadd.f32 0.0, %v1230
        %v1232 = vpop.f32.mrb[0].mxu0
        %1233 = vmatprep.mubr.bf16.mxu0 0
        %1234 = vmatmul.mubr.bf16.gmra.mrb[0].mxu0 %v858
        %v1235 = vpop.f32.mrb[0].mxu0
        %v1236 = vadd.f32 0.0, %v1235
        %v1237 = vpop.f32.mrb[0].mxu0
        %v1238 = vpop.f32.mrb[0].mxu0
        %v1239 = vadd.f32 0.0, %v1238
        %v1240 = vpop.f32.mrb[0].mxu0
        %1241 = vmatprep.mubr.bf16.mxu0 0
        %1242 = vmatmul.mubr.bf16.gmra.mrb[0].mxu0 %v859
        %v1243 = vpop.f32.mrb[0].mxu0
        %v1244 = vadd.f32 0.0, %v1243
        %v1245 = vpop.f32.mrb[0].mxu0
        %v1246 = vpop.f32.mrb[0].mxu0
        %v1247 = vadd.f32 0.0, %v1246
        %v1248 = vpop.f32.mrb[0].mxu0
        %1249 = vmatprep.mubr.bf16.mxu0 0
        %1250 = vmatmul.mubr.bf16.gmra.mrb[0].mxu0 %v860
        %v1251 = vpop.f32.mrb[0].mxu0
        %v1252 = vadd.f32 0.0, %v1251
        %v1253 = vpop.f32.mrb[0].mxu0
        %v1254 = vpop.f32.mrb[0].mxu0
        %v1255 = vadd.f32 0.0, %v1254
        %v1256 = vpop.f32.mrb[0].mxu0
        %1257 = vmatprep.mubr.bf16.mxu0 0
        %1258 = vmatmul.mubr.bf16.gmra.mrb[0].mxu0 %v861
        %v1259 = vpop.f32.mrb[0].mxu0
        %v1260 = vadd.f32 0.0, %v1259
        %v1261 = vpop.f32.mrb[0].mxu0
        %v1262 = vpop.f32.mrb[0].mxu0
        %v1263 = vadd.f32 0.0, %v1262
        %v1264 = vpop.f32.mrb[0].mxu0
        %1265 = vmatprep.mubr.bf16.mxu0 0
        %1266 = vmatmul.mubr.bf16.gmra.mrb[0].mxu0 %v862
        %v1267 = vpop.f32.mrb[0].mxu0
        %v1268 = vadd.f32 0.0, %v1267
        %v1269 = vpop.f32.mrb[0].mxu0
        %v1270 = vpop.f32.mrb[0].mxu0
        %v1271 = vadd.f32 0.0, %v1270
        %v1272 = vpop.f32.mrb[0].mxu0
        %1273 = vmatprep.mubr.bf16.mxu0 0
        %1274 = vmatmul.mubr.bf16.gmra.mrb[0].mxu0 %v863
        %v1275 = vpop.f32.mrb[0].mxu0
        %v1276 = vadd.f32 0.0, %v1275
        %v1277 = vpop.f32.mrb[0].mxu0
        %v1278 = vpop.f32.mrb[0].mxu0
        %v1279 = vadd.f32 0.0, %v1278
        %v1280 = vpop.f32.mrb[0].mxu0
        %1281 = vdwg.mxu0
        %v1282 = vpack.c.bf16 %v1223, %v1220
        %v1283 = vpack.c.bf16 %v1231, %v1228
        %v1284 = vpack.c.bf16 %v1239, %v1236
        %v1285 = vpack.c.bf16 %v1247, %v1244
        %v1286 = vpack.c.bf16 %v1255, %v1252
        %v1287 = vpack.c.bf16 %v1263, %v1260
        %v1288 = vpack.c.bf16 %v1271, %v1268
        %v1289 = vpack.c.bf16 %v1279, %v1276
        %v1298 = vunpack.c.l.b16 %v1282
        %v1299 = vunpack.c.h.b16 %v1282
        %v1300 = vunpack.c.l.b16 %v1283
        %v1301 = vunpack.c.h.b16 %v1283
        %v1302 = vunpack.c.l.b16 %v1284
        %v1303 = vunpack.c.h.b16 %v1284
        %v1304 = vunpack.c.l.b16 %v1285
        %v1305 = vunpack.c.h.b16 %v1285
        %v1306 = vunpack.c.l.b16 %v1286
        %v1307 = vunpack.c.h.b16 %v1286
        %v1308 = vunpack.c.l.b16 %v1287
        %v1309 = vunpack.c.h.b16 %v1287
        %v1310 = vunpack.c.l.b16 %v1288
        %v1311 = vunpack.c.h.b16 %v1288
        %v1312 = vunpack.c.l.b16 %v1289
        %v1313 = vunpack.c.h.b16 %v1289
        %v1314 = vpack.c.b16 %v1298, %v1298
        %v1315 = vpack.c.b16 %v1299, %v1299
        %v1316 = vpack.c.b16 %v1300, %v1300
        %v1317 = vpack.c.b16 %v1301, %v1301
        %v1318 = vpack.c.b16 %v1302, %v1302
        %v1319 = vpack.c.b16 %v1303, %v1303
        %v1320 = vpack.c.b16 %v1304, %v1304
        %v1321 = vpack.c.b16 %v1305, %v1305
        %v1322 = vpack.c.b16 %v1306, %v1306
        %v1323 = vpack.c.b16 %v1307, %v1307
        %v1324 = vpack.c.b16 %v1308, %v1308
        %v1325 = vpack.c.b16 %v1309, %v1309
        %v1326 = vpack.c.b16 %v1310, %v1310
        %v1327 = vpack.c.b16 %v1311, %v1311
        %v1328 = vpack.c.b16 %v1312, %v1312
        %v1329 = vpack.c.b16 %v1313, %v1313
        %1346 = vst [vmem:[%s361] sm:$0xf] %v1314
        %1347 = vst [vmem:[%s361 + $0x4] sm:$0xf] %v1315
        %1348 = vst [vmem:[%s361 + $0x8] sm:$0xf] %v1316
        %1349 = vst [vmem:[%s361 + $0xc] sm:$0xf] %v1317
        %1350 = vst [vmem:[%s361 + $0x10] sm:$0xf] %v1318
        %1351 = vst [vmem:[%s361 + $0x14] sm:$0xf] %v1319
        %1352 = vst [vmem:[%s361 + $0x18] sm:$0xf] %v1320
        %1353 = vst [vmem:[%s361 + $0x1c] sm:$0xf] %v1321
        %1354 = vst [vmem:[%s361 + $0x20] sm:$0xf] %v1322
        %1355 = vst [vmem:[%s361 + $0x24] sm:$0xf] %v1323
        %1356 = vst [vmem:[%s361 + $0x28] sm:$0xf] %v1324
        %1357 = vst [vmem:[%s361 + $0x2c] sm:$0xf] %v1325
        %1358 = vst [vmem:[%s361 + $0x30] sm:$0xf] %v1326
        %1359 = vst [vmem:[%s361 + $0x34] sm:$0xf] %v1327
        %1360 = vst [vmem:[%s361 + $0x38] sm:$0xf] %v1328
        %1361 = vst [vmem:[%s361 + $0x3c] sm:$0xf] %v1329
        %s1362 = sand.u32 %s154, 1
        %s1363 = scalar_lea.sflag [#allocation4], %s1362
        %s1364 = sand.u32 %s154, 1
        %s1365 = smul.addr %s1364, 64
        %s1366 = scalar_lea.vmem [#allocation11], %s1365
        %s1367 = sand.u32 %s180, 1
        %s1368 = scalar_lea.sflag [#allocation13], %s1367
        %s1369 = sand.u32 %s180, 1
        %s1370 = smul.addr %s1369, 64
        %s1371 = scalar_lea.vmem [#allocation12], %s1370
        // Predicated region
        $region61: #{tpu_custom_call.1} parent=39 // pred_check
          %p1372 = pneg %p164
        $region62: #{tpu_custom_call.1} parent=39 // pred_check_branch
          %1374 = sbr.rel (%p1372) target = $region64
        $region63: #{tpu_custom_call.1} parent=39 // pred_region
          %s1376 = ssub.s32 1024, 1024
          %1377 = vsyncadd %s1363, %s1376
          %s1378 = smul.addr %s31, 16
          %s1379 = smul.addr %s1378, 64
          %s1380 = scalar_lea.hbm %s5, %s1379
          %s1381 = sshll.u32 %s1366, 4
          %s1382 = int_to_ptr.vmem [resolvable:$true] %s1381
          %1387 = dma.vmem_to_hbm [thread:$0]  %s1382, 1024, %s1380, %s1363, 64, 64, 4
        $region64: #{tpu_custom_call.1} parent=39 // pred_fallthru
          _
        // Predicated region
        $region65: #{tpu_custom_call.1} parent=39 // pred_check
          %p1388 = pneg %p190
        $region66: #{tpu_custom_call.1} parent=39 // pred_check_branch
          %1390 = sbr.rel (%p1388) target = $region68
        $region67: #{tpu_custom_call.1} parent=39 // pred_region
          %s1392 = ssub.s32 1024, 1024
          %1393 = vsyncadd %s1368, %s1392
          %s1394 = smul.addr %s31, 16
          %s1395 = smul.addr %s1394, 64
          %s1396 = scalar_lea.hbm %s6, %s1395
          %s1397 = sshll.u32 %s1371, 4
          %s1398 = int_to_ptr.vmem [resolvable:$true] %s1397
          %1403 = dma.vmem_to_hbm [thread:$0]  %s1398, 1024, %s1396, %s1368, 64, 64, 4
        $region68: #{tpu_custom_call.1} parent=39 // pred_fallthru
          _
      $region40: #{tpu_custom_call.1} parent=5 // pred_fallthru
        _
      %p1404 = scmp.le.s32.totalorder 2, %s26
      // Predicated region
      $region69: #{tpu_custom_call.1} parent=5 // pred_check
        %p1405 = pneg %p1404
      $region70: #{tpu_custom_call.1} parent=5 // pred_check_branch
        %1407 = sbr.rel (%p1405) target = $region72
      $region71: #{tpu_custom_call.1} parent=5 // pred_region
        %s1408 = ssub.s32 %s26, 2
        // Predicated region
        $region73: #{tpu_custom_call.1} parent=71 // pred_check
          %p1409 = pneg %p170
        $region74: #{tpu_custom_call.1} parent=71 // pred_check_branch
          %1411 = sbr.rel (%p1409) target = $region76
        $region75: #{tpu_custom_call.1} parent=71 // pred_region
          %s1412 = sand.u32 %s155, 1
          %s1413 = scalar_lea.sflag [#allocation4], %s1412
          %s1414 = sand.u32 %s155, 1
          %s1415 = smul.addr %s1414, 64
          %s1416 = scalar_lea.vmem [#allocation11], %s1415
          %1417 = dma.done %s1413, 1024
        $region76: #{tpu_custom_call.1} parent=71 // pred_fallthru
          _
        // Predicated region
        $region77: #{tpu_custom_call.1} parent=71 // pred_check
          %p1418 = pneg %p196
        $region78: #{tpu_custom_call.1} parent=71 // pred_check_branch
          %1420 = sbr.rel (%p1418) target = $region80
        $region79: #{tpu_custom_call.1} parent=71 // pred_region
          %s1421 = sand.u32 %s181, 1
          %s1422 = scalar_lea.sflag [#allocation13], %s1421
          %s1423 = sand.u32 %s181, 1
          %s1424 = smul.addr %s1423, 64
          %s1425 = scalar_lea.vmem [#allocation12], %s1424
          %1426 = dma.done %s1422, 1024
        $region80: #{tpu_custom_call.1} parent=71 // pred_fallthru
          _
      $region72: #{tpu_custom_call.1} parent=5 // pred_fallthru
        _
    $region6: #{tpu_custom_call.1} parent=1 // loop_footer
      %s30 = sadd.s32 1, %s26
    $region7: #{tpu_custom_call.1} parent=1 // loop_footer_branch
      %25 = sbr.rel target = $region3
    $region8: #{tpu_custom_call.1} parent=1 // loop_exit
      _
    %1427 = vsyncpa [#allocation3], 1
    %s1428 = scalar_lea.sflag [#allocation3], 1
    %1429 = vsyncpa %s1428, 1
    %1430 = vsyncpa [#allocation6], 1
    %s1431 = scalar_lea.sflag [#allocation6], 1
    %1432 = vsyncpa %s1431, 1
    %1433 = vsyncpa [#allocation9], 1
    %1434 = vsyncpa [#allocation4], 1
    %s1435 = scalar_lea.sflag [#allocation4], 1
    %1436 = vsyncpa %s1435, 1
    %1437 = vsyncpa [#allocation13], 1
    %s1438 = scalar_lea.sflag [#allocation13], 1
    %1439 = vsyncpa %s1438, 1

</llo_original>
